<compile_context>
chip_gen: v5e
topology: v5e:2x2
jax: 0.10.0
libtpu: 0.0.40
codegen_flags: <defaults>
</compile_context>

<pallas_src>
import functools

import numpy as np
import jax
import jax.numpy as jnp
from jax import lax
from jax.experimental import pallas as pl
from jax.experimental.pallas import tpu as pltpu


def _round_up(n, m):
    return (n + m - 1) // m * m


def goalnet_kernel(x_ref, wih_ref, whh_ref, b_ref, wfc_ref, bfc_ref,
                   y_ref, hn_ref, cn_ref,
                   gx_sc, hs_sc, h_sc, c_sc, *, T, Tc, Bp, H):
    chunk = pl.program_id(0)

    # Carried recurrent state lives in VMEM scratch that persists across grid steps.
    @pl.when(chunk == 0)
    def _():
        h_sc[...] = jnp.zeros_like(h_sc)
        c_sc[...] = jnp.zeros_like(c_sc)

    # ---- Phase 1: batched input projection for the whole chunk (bf16 MXU, f32 acc). ----
    # x_ref is time-major & flattened: rows [t*Bp:(t+1)*Bp] belong to local timestep t.
    gx_sc[...] = (jnp.dot(x_ref[...], wih_ref[...],
                          preferred_element_type=jnp.float32) + b_ref[...])

    # ---- Phase 2: sequential recurrence; only h @ W_hh per step (bf16 MXU, f32 acc). ----
    whh = whh_ref[...]                      # hoisted out of the loop (bf16)
    t0 = chunk * Tc

    def step(t, carry):
        h, c = carry
        r = pl.multiple_of(t * Bp, Bp)
        gates = gx_sc[pl.ds(r, Bp), :] + jnp.dot(
            h.astype(whh.dtype), whh, preferred_element_type=jnp.float32)   # (Bp, 4H) f32
        # All four gates in ONE sigmoid dispatch.  Gate columns packed (i, f, o | g) and
        # tanh(g) = 2*sigmoid(2g) - 1 with the 2x folded into the g weights/bias.
        sig = jax.nn.sigmoid(gates)
        i_g = sig[:, 0 * H:1 * H]
        f_g = sig[:, 1 * H:2 * H]
        o_g = sig[:, 2 * H:3 * H]
        g_g = 2.0 * sig[:, 3 * H:4 * H] - 1.0
        c_new = f_g * c + i_g * g_g
        h_new = o_g * jnp.tanh(c_new)
        valid = (t0 + t) < T                # mask the time-padding tail (keeps h/c exact)
        h_new = jnp.where(valid, h_new, h)
        c_new = jnp.where(valid, c_new, c)
        hs_sc[pl.ds(r, Bp), :] = h_new.astype(hs_sc.dtype)
        return h_new, c_new

    h_fin, c_fin = lax.fori_loop(0, Tc, step, (h_sc[...], c_sc[...]),
                                 unroll=(Tc if Tc <= 8 else 8))
    h_sc[...] = h_fin
    c_sc[...] = c_fin

    # ---- Phase 3: dropout == identity (eval); one batched fc matmul, lane-dense store
    #      (Op is padded to a multiple of 128 so this is a full-width vst). ----
    y_ref[...] = (jnp.dot(hs_sc[...], wfc_ref[...],
                          preferred_element_type=jnp.float32)
                  + bfc_ref[...]).astype(y_ref.dtype)

    @pl.when(chunk == pl.num_programs(0) - 1)
    def _():
        hn_ref[...] = h_fin
        cn_ref[...] = c_fin


def _choose_time_chunk(T, Bp, I, H, Op, budget_bytes=16 * 1024 * 1024):
    """Largest power-of-two-ish time chunk whose working set fits the VMEM budget."""
    def chunk_bytes(tc):
        return (tc * Bp * I * 2 * 2          # x chunk  (bf16, double-buffered)
                + tc * Bp * Op * 4 * 2       # y chunk  (f32,  double-buffered)
                + tc * Bp * 4 * H * 4        # gates_x scratch (f32)
                + tc * Bp * H * 2)           # h_t slab scratch (bf16)
    tc = min(T, 128)
    while tc > 8 and chunk_bytes(tc) > budget_bytes:
        tc = (tc + 1) // 2
    tc = max(tc, 1)
    return tc, chunk_bytes(tc)


def goalnet_forward(x, params):
    """x: (B, T, I) float32. Returns (y, (h_n, c_n)) mirroring the PyTorch module."""
    B, T, I = x.shape
    assert T >= 1, "empty sequences not supported"
    wih_T = params["wih_T"]        # (I, 4H) bf16, gate cols packed (i,f,o,g), g cols x2
    whh_T = params["whh_T"]        # (H, 4H) bf16, same packing/scaling
    b = params["b"]                # (1, 4H) f32 == (bias_ih + bias_hh), same packing
    wfc_T = params["wfc_T"]        # (H, Op) bf16, zero-padded lanes beyond O
    bfc = params["bfc"]            # (1, Op) f32, zero-padded
    O = int(params["out_size"])
    H = whh_T.shape[0]
    Op = wfc_T.shape[1]

    # Pad batch to a sublane multiple (8): full vreg occupancy, tile-aligned slabs.
    Bp = max(_round_up(B, 8), 8)
    # Time chunking: bounds VMEM and gives double-buffered DMA of x/y chunks.
    Tc, chunk_bytes = _choose_time_chunk(T, Bp, I, H, Op)
    Tpad = _round_up(T, Tc)
    n_chunks = Tpad // Tc

    # Time-major, flattened to 2-D outside the kernel (the transpose is one extra HBM
    # pass of x; negligible at these sizes -- see TODO at top for production layout).
    x_tm = jnp.zeros((Tpad, Bp, I), jnp.bfloat16)
    x_tm = x_tm.at[:T, :B].set(jnp.swapaxes(x, 0, 1).astype(jnp.bfloat16))
    x2d = x_tm.reshape(Tpad * Bp, I)

    kernel = functools.partial(goalnet_kernel, T=T, Tc=Tc, Bp=Bp, H=H)

    weight_bytes = (wih_T.size + whh_T.size + wfc_T.size) * 2 + (b.size + bfc.size) * 4
    vmem_limit = int(min(48 * 1024 * 1024,
                         max(16 * 1024 * 1024, 3 * (chunk_bytes + weight_bytes))))

    cost = pl.CostEstimate(
        flops=int(2 * Tpad * Bp * (I + H) * 4 * H + 2 * Tpad * Bp * H * Op),
        transcendentals=int(5 * Tpad * Bp * H),
        bytes_accessed=int(Tpad * Bp * I * 2 + weight_bytes
                           + Tpad * Bp * Op * 4 + 2 * Bp * H * 4),
    )

    y2d, h_n, c_n = pl.pallas_call(
        kernel,
        out_shape=(
            jax.ShapeDtypeStruct((Tpad * Bp, Op), jnp.float32),
            jax.ShapeDtypeStruct((Bp, H), jnp.float32),
            jax.ShapeDtypeStruct((Bp, H), jnp.float32),
        ),
        grid_spec=pltpu.PrefetchScalarGridSpec(
            num_scalar_prefetch=0,
            grid=(n_chunks,),
            in_specs=[
                pl.BlockSpec((Tc * Bp, I), lambda t: (t, 0)),
                pl.BlockSpec((I, 4 * H), lambda t: (0, 0)),
                pl.BlockSpec((H, 4 * H), lambda t: (0, 0)),
                pl.BlockSpec((1, 4 * H), lambda t: (0, 0)),
                pl.BlockSpec((H, Op), lambda t: (0, 0)),
                pl.BlockSpec((1, Op), lambda t: (0, 0)),
            ],
            out_specs=[
                pl.BlockSpec((Tc * Bp, Op), lambda t: (t, 0)),
                pl.BlockSpec((Bp, H), lambda t: (0, 0)),
                pl.BlockSpec((Bp, H), lambda t: (0, 0)),
            ],
            scratch_shapes=[
                pltpu.VMEM((Tc * Bp, 4 * H), jnp.float32),   # gates_x for one chunk
                pltpu.VMEM((Tc * Bp, H), jnp.bfloat16),      # h_t slab for one chunk
                pltpu.VMEM((Bp, H), jnp.float32),            # carried h
                pltpu.VMEM((Bp, H), jnp.float32),            # carried c
            ],
        ),
        compiler_params=pltpu.CompilerParams(
            dimension_semantics=("arbitrary",),   # time recurrence is sequential
            vmem_limit_bytes=vmem_limit,
        ),
        cost_estimate=cost,
    )(x2d, wih_T, whh_T, b, wfc_T, bfc)

    y = jnp.swapaxes(y2d.reshape(Tpad, Bp, Op), 0, 1)[:B, :T, :O]      # (B, T, O)
    # PyTorch returns hidden as ((num_layers=1, B, H), (1, B, H))
    return y, (h_n[:B][None, :, :], c_n[:B][None, :, :])


# ----------------------------------------------------------------------------- #
# Parameter handling: init in PyTorch layout, convert to the kernel layout.      #
# ----------------------------------------------------------------------------- #
def init_torch_style_params(key, input_size, hidden_size, output_size):
    """PyTorch-layout weights: w_ih (4H,I), w_hh (4H,H), biases (4H,), fc (O,H),(O,)."""
    ks = jax.random.split(key, 6)
    s = 1.0 / np.sqrt(hidden_size)
    w_ih = jax.random.uniform(ks[0], (4 * hidden_size, input_size), jnp.float32, -s, s)
    w_hh = jax.random.uniform(ks[1], (4 * hidden_size, hidden_size), jnp.float32, -s, s)
    b_ih = jax.random.uniform(ks[2], (4 * hidden_size,), jnp.float32, -s, s)
    b_hh = jax.random.uniform(ks[3], (4 * hidden_size,), jnp.float32, -s, s)
    w_fc = jax.random.uniform(ks[4], (output_size, hidden_size), jnp.float32, -s, s)
    b_fc = jax.random.uniform(ks[5], (output_size,), jnp.float32, -s, s)
    return dict(w_ih=w_ih, w_hh=w_hh, b_ih=b_ih, b_hh=b_hh, w_fc=w_fc, b_fc=b_fc)


def prepare_kernel_params(tp):
    """PyTorch gate order (i,f,g,o) -> kernel packing (i,f,o,g); transpose; fuse bias;
    pre-scale g-gate columns by 2 (tanh-via-sigmoid fold); bf16 MXU operands; pad fc
    output to a lane-dense width (multiple of 128)."""
    H = tp["w_hh"].shape[1]
    O = tp["w_fc"].shape[0]
    perm = np.concatenate([np.arange(0, 2 * H),          # i, f
                           np.arange(3 * H, 4 * H),      # o
                           np.arange(2 * H, 3 * H)])     # g
    scale = np.ones((4 * H, 1), np.float32)
    scale[3 * H:] = 2.0                                  # x2 on the g gate (exact in bf16)

    w_ih = np.asarray(tp["w_ih"])[perm] * scale          # (4H, I)
    w_hh = np.asarray(tp["w_hh"])[perm] * scale          # (4H, H)
    b = (np.asarray(tp["b_ih"]) + np.asarray(tp["b_hh"]))[perm] * scale[:, 0]

    Op = max(_round_up(O, 128), 128)
    wfc_T = np.zeros((H, Op), np.float32)
    wfc_T[:, :O] = np.asarray(tp["w_fc"]).T
    bfc = np.zeros((1, Op), np.float32)
    bfc[0, :O] = np.asarray(tp["b_fc"])

    return {
        "wih_T": jnp.asarray(w_ih.T, jnp.bfloat16),      # (I, 4H)
        "whh_T": jnp.asarray(w_hh.T, jnp.bfloat16),      # (H, 4H)
        "b": jnp.asarray(b[None, :], jnp.float32),       # (1, 4H)
        "wfc_T": jnp.asarray(wfc_T, jnp.bfloat16),       # (H, Op)
        "bfc": jnp.asarray(bfc, jnp.float32),            # (1, Op)
        "out_size": O,
    }


def goalnet_reference(x, tp):
    """Pure-JAX f32 reference using raw PyTorch-layout weights (gate order i,f,g,o)."""
    w_ih, w_hh, b_ih, b_hh = tp["w_ih"], tp["w_hh"], tp["b_ih"], tp["b_hh"]
    w_fc, b_fc = tp["w_fc"], tp["b_fc"]
    B, T, _ = x.shape
    H = w_hh.shape[1]

    def step(carry, x_t):
        h, c = carry
        gates = x_t @ w_ih.T + h @ w_hh.T + b_ih + b_hh
        i_g = jax.nn.sigmoid(gates[:, 0 * H:1 * H])
        f_g = jax.nn.sigmoid(gates[:, 1 * H:2 * H])
        g_g = jnp.tanh(gates[:, 2 * H:3 * H])
        o_g = jax.nn.sigmoid(gates[:, 3 * H:4 * H])
        c_new = f_g * c + i_g * g_g
        h_new = o_g * jnp.tanh(c_new)
        return (h_new, c_new), h_new

    h0 = jnp.zeros((B, H), jnp.float32)
    c0 = jnp.zeros((B, H), jnp.float32)
    (h_n, c_n), hs = lax.scan(step, (h0, c0), jnp.swapaxes(x, 0, 1))
    hs = jnp.swapaxes(hs, 0, 1)                      # (B, T, H)
    y = hs @ w_fc.T + b_fc
    return y, (h_n[None], c_n[None])


if __name__ == "__main__":
    B, T, I, H, O = 2, 8, 16, 32, 8
    key = jax.random.PRNGKey(0)
    k_x, k_p = jax.random.split(key)
    x = jax.random.normal(k_x, (B, T, I), jnp.float32)

    torch_params = init_torch_style_params(k_p, I, H, O)
    kernel_params = prepare_kernel_params(torch_params)

    y, (h_n, c_n) = goalnet_forward(x, kernel_params)
    jax.block_until_ready((y, h_n, c_n))

    y_ref, (h_ref, c_ref) = goalnet_reference(x, torch_params)
    # bf16 MXU operands + bf16 h_t slab -> loosened tolerance vs the f32 reference.
    np.testing.assert_allclose(np.asarray(y), np.asarray(y_ref), rtol=5e-2, atol=5e-2)
    np.testing.assert_allclose(np.asarray(h_n), np.asarray(h_ref), rtol=5e-2, atol=5e-2)
    np.testing.assert_allclose(np.asarray(c_n), np.asarray(c_ref), rtol=5e-2, atol=5e-2)

    print("KERNEL_OK")
</pallas_src>

<mosaic_0001>
module attributes {stable_mosaic.version = 11 : i64} {
  func.func @goalnet_kernel(%arg0: i32, %arg1: memref<64x16xbf16, #tpu.memory_space<vmem>>, %arg2: memref<16x128xbf16, #tpu.memory_space<vmem>>, %arg3: memref<32x128xbf16, #tpu.memory_space<vmem>>, %arg4: memref<1x128xf32, #tpu.memory_space<vmem>>, %arg5: memref<32x128xbf16, #tpu.memory_space<vmem>>, %arg6: memref<1x128xf32, #tpu.memory_space<vmem>>, %arg7: memref<64x128xf32, #tpu.memory_space<vmem>>, %arg8: memref<8x32xf32, #tpu.memory_space<vmem>>, %arg9: memref<8x32xf32, #tpu.memory_space<vmem>>, %arg10: memref<64x128xf32, #tpu.memory_space<vmem>>, %arg11: memref<64x32xbf16, #tpu.memory_space<vmem>>, %arg12: memref<8x32xf32, #tpu.memory_space<vmem>>, %arg13: memref<8x32xf32, #tpu.memory_space<vmem>>) attributes {dimension_semantics = [#tpu.dimension_semantics<arbitrary>], iteration_bounds = array<i64: 1>, scalar_prefetch = 0 : i64, scratch_operands = 4 : i64, tpu.core_type = #tpu.core_type<tc>, window_params = [{transform_indices = @transform_0, window_bounds = array<i64: 64, 16>}, {pipeline_mode = #tpu.pipeline_mode<synchronous>, transform_indices = @transform_1, window_bounds = array<i64: 16, 128>}, {pipeline_mode = #tpu.pipeline_mode<synchronous>, transform_indices = @transform_2, window_bounds = array<i64: 32, 128>}, {pipeline_mode = #tpu.pipeline_mode<synchronous>, transform_indices = @transform_3, window_bounds = array<i64: 1, 128>}, {pipeline_mode = #tpu.pipeline_mode<synchronous>, transform_indices = @transform_4, window_bounds = array<i64: 32, 128>}, {pipeline_mode = #tpu.pipeline_mode<synchronous>, transform_indices = @transform_5, window_bounds = array<i64: 1, 128>}, {transform_indices = @transform_6, window_bounds = array<i64: 64, 128>}, {pipeline_mode = #tpu.pipeline_mode<synchronous>, transform_indices = @transform_7, window_bounds = array<i64: 8, 32>}, {pipeline_mode = #tpu.pipeline_mode<synchronous>, transform_indices = @transform_8, window_bounds = array<i64: 8, 32>}]} {
    %c0_i32 = arith.constant 0 : i32
    %0 = arith.cmpi eq, %arg0, %c0_i32 : i32
    %1 = arith.extui %0 : i1 to i32
    %c0_i32_0 = arith.constant 0 : i32
    %2 = arith.cmpi ne, %1, %c0_i32_0 : i32
    scf.if %2 {
      %cst_95 = arith.constant 0.000000e+00 : f32
      %282 = vector.broadcast %cst_95 : f32 to vector<8x32xf32>
      %c0_96 = arith.constant 0 : index
      %c0_97 = arith.constant 0 : index
      %283 = vector.load %arg12[%c0_96, %c0_97] : memref<8x32xf32, #tpu.memory_space<vmem>>, vector<8x32xf32>
      tpu.vector_store %arg12[%c0_96, %c0_97], %282 {strides = array<i32>} : memref<8x32xf32, #tpu.memory_space<vmem>>, vector<8x32xf32>,
      %cst_98 = arith.constant 0.000000e+00 : f32
      %284 = vector.broadcast %cst_98 : f32 to vector<8x32xf32>
      %c0_99 = arith.constant 0 : index
      %c0_100 = arith.constant 0 : index
      %285 = vector.load %arg13[%c0_99, %c0_100] : memref<8x32xf32, #tpu.memory_space<vmem>>, vector<8x32xf32>
      tpu.vector_store %arg13[%c0_99, %c0_100], %284 {strides = array<i32>} : memref<8x32xf32, #tpu.memory_space<vmem>>, vector<8x32xf32>,
    } else {
    }
    %c0 = arith.constant 0 : index
    %c0_1 = arith.constant 0 : index
    %3 = vector.load %arg1[%c0, %c0_1] : memref<64x16xbf16, #tpu.memory_space<vmem>>, vector<64x16xbf16>
    %c0_2 = arith.constant 0 : index
    %c0_3 = arith.constant 0 : index
    %4 = vector.load %arg2[%c0_2, %c0_3] : memref<16x128xbf16, #tpu.memory_space<vmem>>, vector<16x128xbf16>
    %cst = arith.constant dense<0.000000e+00> : vector<64x128xf32>
    %5 = tpu.matmul %3, %4, %cst {dimension_numbers = #tpu.dot_dimension_numbers<[1], [0], [0], [1], [0, 0, 1, 1], [], []>} : vector<64x16xbf16>, vector<16x128xbf16>, vector<64x128xf32> -> vector<64x128xf32>
    %c0_4 = arith.constant 0 : index
    %c0_5 = arith.constant 0 : index
    %6 = vector.load %arg4[%c0_4, %c0_5] : memref<1x128xf32, #tpu.memory_space<vmem>>, vector<1x128xf32>
    %7 = vector.broadcast %6 : vector<1x128xf32> to vector<64x128xf32>
    %8 = arith.addf %5, %7 : vector<64x128xf32>
    %c0_6 = arith.constant 0 : index
    %c0_7 = arith.constant 0 : index
    %9 = vector.load %arg10[%c0_6, %c0_7] : memref<64x128xf32, #tpu.memory_space<vmem>>, vector<64x128xf32>
    tpu.vector_store %arg10[%c0_6, %c0_7], %8 {strides = array<i32>} : memref<64x128xf32, #tpu.memory_space<vmem>>, vector<64x128xf32>,
    %c0_8 = arith.constant 0 : index
    %c0_9 = arith.constant 0 : index
    %10 = vector.load %arg3[%c0_8, %c0_9] : memref<32x128xbf16, #tpu.memory_space<vmem>>, vector<32x128xbf16>
    %c8_i32 = arith.constant 8 : i32
    %11 = arith.muli %arg0, %c8_i32 : i32
    %c0_10 = arith.constant 0 : index
    %c0_11 = arith.constant 0 : index
    %12 = vector.load %arg12[%c0_10, %c0_11] : memref<8x32xf32, #tpu.memory_space<vmem>>, vector<8x32xf32>
    %c0_12 = arith.constant 0 : index
    %c0_13 = arith.constant 0 : index
    %13 = vector.load %arg13[%c0_12, %c0_13] : memref<8x32xf32, #tpu.memory_space<vmem>>, vector<8x32xf32>
    %c0_i32_14 = arith.constant 0 : i32
    %c8_i32_15 = arith.constant 8 : i32
    %14 = arith.muli %c0_i32_14, %c8_i32_15 : i32
    %15 = tpu.assume_multiple %14, 8 : i32
    %16 = arith.index_cast %15 : i32 to index
    %c0_16 = arith.constant 0 : index
    %17 = vector.load %arg10[%16, %c0_16] : memref<64x128xf32, #tpu.memory_space<vmem>>, vector<8x128xf32>
    %18 = arith.truncf %12 : vector<8x32xf32> to vector<8x32xbf16>
    %cst_17 = arith.constant dense<0.000000e+00> : vector<8x128xf32>
    %19 = tpu.matmul %18, %10, %cst_17 {dimension_numbers = #tpu.dot_dimension_numbers<[1], [0], [0], [1], [0, 0, 1, 1], [], []>} : vector<8x32xbf16>, vector<32x128xbf16>, vector<8x128xf32> -> vector<8x128xf32>
    %20 = arith.addf %17, %19 : vector<8x128xf32>
    %21 = arith.negf %20 : vector<8x128xf32>
    %22 = math.exp %21 : vector<8x128xf32>
    %cst_18 = arith.constant 1.000000e+00 : f32
    %23 = vector.broadcast %cst_18 : f32 to vector<8x128xf32>
    %24 = arith.addf %23, %22 : vector<8x128xf32>
    %25 = arith.divf %23, %24 : vector<8x128xf32>
    %26 = vector.extract_strided_slice %25 {offsets = [0, 0], sizes = [8, 32], strides = [1, 1]} : vector<8x128xf32> to vector<8x32xf32>
    %27 = vector.extract_strided_slice %25 {offsets = [0, 32], sizes = [8, 32], strides = [1, 1]} : vector<8x128xf32> to vector<8x32xf32>
    %28 = vector.extract_strided_slice %25 {offsets = [0, 64], sizes = [8, 32], strides = [1, 1]} : vector<8x128xf32> to vector<8x32xf32>
    %29 = vector.extract_strided_slice %25 {offsets = [0, 96], sizes = [8, 32], strides = [1, 1]} : vector<8x128xf32> to vector<8x32xf32>
    %cst_19 = arith.constant 2.000000e+00 : f32
    %30 = vector.broadcast %cst_19 : f32 to vector<8x32xf32>
    %31 = arith.mulf %30, %29 : vector<8x32xf32>
    %cst_20 = arith.constant 1.000000e+00 : f32
    %32 = vector.broadcast %cst_20 : f32 to vector<8x32xf32>
    %33 = arith.subf %31, %32 : vector<8x32xf32>
    %34 = arith.mulf %27, %13 : vector<8x32xf32>
    %35 = arith.mulf %26, %33 : vector<8x32xf32>
    %36 = arith.addf %34, %35 : vector<8x32xf32>
    %37 = math.tanh %36 : vector<8x32xf32>
    %38 = arith.mulf %28, %37 : vector<8x32xf32>
    %39 = arith.addi %11, %c0_i32_14 : i32
    %c8_i32_21 = arith.constant 8 : i32
    %40 = arith.cmpi slt, %39, %c8_i32_21 : i32
    %41 = arith.select %40, %38, %12 : vector<8x32xf32>
    %42 = arith.select %40, %36, %13 : vector<8x32xf32>
    %43 = arith.truncf %41 : vector<8x32xf32> to vector<8x32xbf16>
    %44 = arith.index_cast %15 : i32 to index
    %c0_22 = arith.constant 0 : index
    %45 = vector.load %arg11[%44, %c0_22] : memref<64x32xbf16, #tpu.memory_space<vmem>>, vector<8x32xbf16>
    tpu.vector_store %arg11[%44, %c0_22], %43 {strides = array<i32>} : memref<64x32xbf16, #tpu.memory_space<vmem>>, vector<8x32xbf16>,
    %c1_i32 = arith.constant 1 : i32
    %c8_i32_23 = arith.constant 8 : i32
    %46 = arith.muli %c1_i32, %c8_i32_23 : i32
    %47 = tpu.assume_multiple %46, 8 : i32
    %48 = arith.index_cast %47 : i32 to index
    %c0_24 = arith.constant 0 : index
    %49 = vector.load %arg10[%48, %c0_24] : memref<64x128xf32, #tpu.memory_space<vmem>>, vector<8x128xf32>
    %50 = arith.truncf %41 : vector<8x32xf32> to vector<8x32xbf16>
    %cst_25 = arith.constant dense<0.000000e+00> : vector<8x128xf32>
    %51 = tpu.matmul %50, %10, %cst_25 {dimension_numbers = #tpu.dot_dimension_numbers<[1], [0], [0], [1], [0, 0, 1, 1], [], []>} : vector<8x32xbf16>, vector<32x128xbf16>, vector<8x128xf32> -> vector<8x128xf32>
    %52 = arith.addf %49, %51 : vector<8x128xf32>
    %53 = arith.negf %52 : vector<8x128xf32>
    %54 = math.exp %53 : vector<8x128xf32>
    %cst_26 = arith.constant 1.000000e+00 : f32
    %55 = vector.broadcast %cst_26 : f32 to vector<8x128xf32>
    %56 = arith.addf %55, %54 : vector<8x128xf32>
    %57 = arith.divf %55, %56 : vector<8x128xf32>
    %58 = vector.extract_strided_slice %57 {offsets = [0, 0], sizes = [8, 32], strides = [1, 1]} : vector<8x128xf32> to vector<8x32xf32>
    %59 = vector.extract_strided_slice %57 {offsets = [0, 32], sizes = [8, 32], strides = [1, 1]} : vector<8x128xf32> to vector<8x32xf32>
    %60 = vector.extract_strided_slice %57 {offsets = [0, 64], sizes = [8, 32], strides = [1, 1]} : vector<8x128xf32> to vector<8x32xf32>
    %61 = vector.extract_strided_slice %57 {offsets = [0, 96], sizes = [8, 32], strides = [1, 1]} : vector<8x128xf32> to vector<8x32xf32>
    %cst_27 = arith.constant 2.000000e+00 : f32
    %62 = vector.broadcast %cst_27 : f32 to vector<8x32xf32>
    %63 = arith.mulf %62, %61 : vector<8x32xf32>
    %cst_28 = arith.constant 1.000000e+00 : f32
    %64 = vector.broadcast %cst_28 : f32 to vector<8x32xf32>
    %65 = arith.subf %63, %64 : vector<8x32xf32>
    %66 = arith.mulf %59, %42 : vector<8x32xf32>
    %67 = arith.mulf %58, %65 : vector<8x32xf32>
    %68 = arith.addf %66, %67 : vector<8x32xf32>
    %69 = math.tanh %68 : vector<8x32xf32>
    %70 = arith.mulf %60, %69 : vector<8x32xf32>
    %71 = arith.addi %11, %c1_i32 : i32
    %c8_i32_29 = arith.constant 8 : i32
    %72 = arith.cmpi slt, %71, %c8_i32_29 : i32
    %73 = arith.select %72, %70, %41 : vector<8x32xf32>
    %74 = arith.select %72, %68, %42 : vector<8x32xf32>
    %75 = arith.truncf %73 : vector<8x32xf32> to vector<8x32xbf16>
    %76 = arith.index_cast %47 : i32 to index
    %c0_30 = arith.constant 0 : index
    %77 = vector.load %arg11[%76, %c0_30] : memref<64x32xbf16, #tpu.memory_space<vmem>>, vector<8x32xbf16>
    tpu.vector_store %arg11[%76, %c0_30], %75 {strides = array<i32>} : memref<64x32xbf16, #tpu.memory_space<vmem>>, vector<8x32xbf16>,
    %c2_i32 = arith.constant 2 : i32
    %c8_i32_31 = arith.constant 8 : i32
    %78 = arith.muli %c2_i32, %c8_i32_31 : i32
    %79 = tpu.assume_multiple %78, 8 : i32
    %80 = arith.index_cast %79 : i32 to index
    %c0_32 = arith.constant 0 : index
    %81 = vector.load %arg10[%80, %c0_32] : memref<64x128xf32, #tpu.memory_space<vmem>>, vector<8x128xf32>
    %82 = arith.truncf %73 : vector<8x32xf32> to vector<8x32xbf16>
    %cst_33 = arith.constant dense<0.000000e+00> : vector<8x128xf32>
    %83 = tpu.matmul %82, %10, %cst_33 {dimension_numbers = #tpu.dot_dimension_numbers<[1], [0], [0], [1], [0, 0, 1, 1], [], []>} : vector<8x32xbf16>, vector<32x128xbf16>, vector<8x128xf32> -> vector<8x128xf32>
    %84 = arith.addf %81, %83 : vector<8x128xf32>
    %85 = arith.negf %84 : vector<8x128xf32>
    %86 = math.exp %85 : vector<8x128xf32>
    %cst_34 = arith.constant 1.000000e+00 : f32
    %87 = vector.broadcast %cst_34 : f32 to vector<8x128xf32>
    %88 = arith.addf %87, %86 : vector<8x128xf32>
    %89 = arith.divf %87, %88 : vector<8x128xf32>
    %90 = vector.extract_strided_slice %89 {offsets = [0, 0], sizes = [8, 32], strides = [1, 1]} : vector<8x128xf32> to vector<8x32xf32>
    %91 = vector.extract_strided_slice %89 {offsets = [0, 32], sizes = [8, 32], strides = [1, 1]} : vector<8x128xf32> to vector<8x32xf32>
    %92 = vector.extract_strided_slice %89 {offsets = [0, 64], sizes = [8, 32], strides = [1, 1]} : vector<8x128xf32> to vector<8x32xf32>
    %93 = vector.extract_strided_slice %89 {offsets = [0, 96], sizes = [8, 32], strides = [1, 1]} : vector<8x128xf32> to vector<8x32xf32>
    %cst_35 = arith.constant 2.000000e+00 : f32
    %94 = vector.broadcast %cst_35 : f32 to vector<8x32xf32>
    %95 = arith.mulf %94, %93 : vector<8x32xf32>
    %cst_36 = arith.constant 1.000000e+00 : f32
    %96 = vector.broadcast %cst_36 : f32 to vector<8x32xf32>
    %97 = arith.subf %95, %96 : vector<8x32xf32>
    %98 = arith.mulf %91, %74 : vector<8x32xf32>
    %99 = arith.mulf %90, %97 : vector<8x32xf32>
    %100 = arith.addf %98, %99 : vector<8x32xf32>
    %101 = math.tanh %100 : vector<8x32xf32>
    %102 = arith.mulf %92, %101 : vector<8x32xf32>
    %103 = arith.addi %11, %c2_i32 : i32
    %c8_i32_37 = arith.constant 8 : i32
    %104 = arith.cmpi slt, %103, %c8_i32_37 : i32
    %105 = arith.select %104, %102, %73 : vector<8x32xf32>
    %106 = arith.select %104, %100, %74 : vector<8x32xf32>
    %107 = arith.truncf %105 : vector<8x32xf32> to vector<8x32xbf16>
    %108 = arith.index_cast %79 : i32 to index
    %c0_38 = arith.constant 0 : index
    %109 = vector.load %arg11[%108, %c0_38] : memref<64x32xbf16, #tpu.memory_space<vmem>>, vector<8x32xbf16>
    tpu.vector_store %arg11[%108, %c0_38], %107 {strides = array<i32>} : memref<64x32xbf16, #tpu.memory_space<vmem>>, vector<8x32xbf16>,
    %c3_i32 = arith.constant 3 : i32
    %c8_i32_39 = arith.constant 8 : i32
    %110 = arith.muli %c3_i32, %c8_i32_39 : i32
    %111 = tpu.assume_multiple %110, 8 : i32
    %112 = arith.index_cast %111 : i32 to index
    %c0_40 = arith.constant 0 : index
    %113 = vector.load %arg10[%112, %c0_40] : memref<64x128xf32, #tpu.memory_space<vmem>>, vector<8x128xf32>
    %114 = arith.truncf %105 : vector<8x32xf32> to vector<8x32xbf16>
    %cst_41 = arith.constant dense<0.000000e+00> : vector<8x128xf32>
    %115 = tpu.matmul %114, %10, %cst_41 {dimension_numbers = #tpu.dot_dimension_numbers<[1], [0], [0], [1], [0, 0, 1, 1], [], []>} : vector<8x32xbf16>, vector<32x128xbf16>, vector<8x128xf32> -> vector<8x128xf32>
    %116 = arith.addf %113, %115 : vector<8x128xf32>
    %117 = arith.negf %116 : vector<8x128xf32>
    %118 = math.exp %117 : vector<8x128xf32>
    %cst_42 = arith.constant 1.000000e+00 : f32
    %119 = vector.broadcast %cst_42 : f32 to vector<8x128xf32>
    %120 = arith.addf %119, %118 : vector<8x128xf32>
    %121 = arith.divf %119, %120 : vector<8x128xf32>
    %122 = vector.extract_strided_slice %121 {offsets = [0, 0], sizes = [8, 32], strides = [1, 1]} : vector<8x128xf32> to vector<8x32xf32>
    %123 = vector.extract_strided_slice %121 {offsets = [0, 32], sizes = [8, 32], strides = [1, 1]} : vector<8x128xf32> to vector<8x32xf32>
    %124 = vector.extract_strided_slice %121 {offsets = [0, 64], sizes = [8, 32], strides = [1, 1]} : vector<8x128xf32> to vector<8x32xf32>
    %125 = vector.extract_strided_slice %121 {offsets = [0, 96], sizes = [8, 32], strides = [1, 1]} : vector<8x128xf32> to vector<8x32xf32>
    %cst_43 = arith.constant 2.000000e+00 : f32
    %126 = vector.broadcast %cst_43 : f32 to vector<8x32xf32>
    %127 = arith.mulf %126, %125 : vector<8x32xf32>
    %cst_44 = arith.constant 1.000000e+00 : f32
    %128 = vector.broadcast %cst_44 : f32 to vector<8x32xf32>
    %129 = arith.subf %127, %128 : vector<8x32xf32>
    %130 = arith.mulf %123, %106 : vector<8x32xf32>
    %131 = arith.mulf %122, %129 : vector<8x32xf32>
    %132 = arith.addf %130, %131 : vector<8x32xf32>
    %133 = math.tanh %132 : vector<8x32xf32>
    %134 = arith.mulf %124, %133 : vector<8x32xf32>
    %135 = arith.addi %11, %c3_i32 : i32
    %c8_i32_45 = arith.constant 8 : i32
    %136 = arith.cmpi slt, %135, %c8_i32_45 : i32
    %137 = arith.select %136, %134, %105 : vector<8x32xf32>
    %138 = arith.select %136, %132, %106 : vector<8x32xf32>
    %139 = arith.truncf %137 : vector<8x32xf32> to vector<8x32xbf16>
    %140 = arith.index_cast %111 : i32 to index
    %c0_46 = arith.constant 0 : index
    %141 = vector.load %arg11[%140, %c0_46] : memref<64x32xbf16, #tpu.memory_space<vmem>>, vector<8x32xbf16>
    tpu.vector_store %arg11[%140, %c0_46], %139 {strides = array<i32>} : memref<64x32xbf16, #tpu.memory_space<vmem>>, vector<8x32xbf16>,
    %c4_i32 = arith.constant 4 : i32
    %c8_i32_47 = arith.constant 8 : i32
    %142 = arith.muli %c4_i32, %c8_i32_47 : i32
    %143 = tpu.assume_multiple %142, 8 : i32
    %144 = arith.index_cast %143 : i32 to index
    %c0_48 = arith.constant 0 : index
    %145 = vector.load %arg10[%144, %c0_48] : memref<64x128xf32, #tpu.memory_space<vmem>>, vector<8x128xf32>
    %146 = arith.truncf %137 : vector<8x32xf32> to vector<8x32xbf16>
    %cst_49 = arith.constant dense<0.000000e+00> : vector<8x128xf32>
    %147 = tpu.matmul %146, %10, %cst_49 {dimension_numbers = #tpu.dot_dimension_numbers<[1], [0], [0], [1], [0, 0, 1, 1], [], []>} : vector<8x32xbf16>, vector<32x128xbf16>, vector<8x128xf32> -> vector<8x128xf32>
    %148 = arith.addf %145, %147 : vector<8x128xf32>
    %149 = arith.negf %148 : vector<8x128xf32>
    %150 = math.exp %149 : vector<8x128xf32>
    %cst_50 = arith.constant 1.000000e+00 : f32
    %151 = vector.broadcast %cst_50 : f32 to vector<8x128xf32>
    %152 = arith.addf %151, %150 : vector<8x128xf32>
    %153 = arith.divf %151, %152 : vector<8x128xf32>
    %154 = vector.extract_strided_slice %153 {offsets = [0, 0], sizes = [8, 32], strides = [1, 1]} : vector<8x128xf32> to vector<8x32xf32>
    %155 = vector.extract_strided_slice %153 {offsets = [0, 32], sizes = [8, 32], strides = [1, 1]} : vector<8x128xf32> to vector<8x32xf32>
    %156 = vector.extract_strided_slice %153 {offsets = [0, 64], sizes = [8, 32], strides = [1, 1]} : vector<8x128xf32> to vector<8x32xf32>
    %157 = vector.extract_strided_slice %153 {offsets = [0, 96], sizes = [8, 32], strides = [1, 1]} : vector<8x128xf32> to vector<8x32xf32>
    %cst_51 = arith.constant 2.000000e+00 : f32
    %158 = vector.broadcast %cst_51 : f32 to vector<8x32xf32>
    %159 = arith.mulf %158, %157 : vector<8x32xf32>
    %cst_52 = arith.constant 1.000000e+00 : f32
    %160 = vector.broadcast %cst_52 : f32 to vector<8x32xf32>
    %161 = arith.subf %159, %160 : vector<8x32xf32>
    %162 = arith.mulf %155, %138 : vector<8x32xf32>
    %163 = arith.mulf %154, %161 : vector<8x32xf32>
    %164 = arith.addf %162, %163 : vector<8x32xf32>
    %165 = math.tanh %164 : vector<8x32xf32>
    %166 = arith.mulf %156, %165 : vector<8x32xf32>
    %167 = arith.addi %11, %c4_i32 : i32
    %c8_i32_53 = arith.constant 8 : i32
    %168 = arith.cmpi slt, %167, %c8_i32_53 : i32
    %169 = arith.select %168, %166, %137 : vector<8x32xf32>
    %170 = arith.select %168, %164, %138 : vector<8x32xf32>
    %171 = arith.truncf %169 : vector<8x32xf32> to vector<8x32xbf16>
    %172 = arith.index_cast %143 : i32 to index
    %c0_54 = arith.constant 0 : index
    %173 = vector.load %arg11[%172, %c0_54] : memref<64x32xbf16, #tpu.memory_space<vmem>>, vector<8x32xbf16>
    tpu.vector_store %arg11[%172, %c0_54], %171 {strides = array<i32>} : memref<64x32xbf16, #tpu.memory_space<vmem>>, vector<8x32xbf16>,
    %c5_i32 = arith.constant 5 : i32
    %c8_i32_55 = arith.constant 8 : i32
    %174 = arith.muli %c5_i32, %c8_i32_55 : i32
    %175 = tpu.assume_multiple %174, 8 : i32
    %176 = arith.index_cast %175 : i32 to index
    %c0_56 = arith.constant 0 : index
    %177 = vector.load %arg10[%176, %c0_56] : memref<64x128xf32, #tpu.memory_space<vmem>>, vector<8x128xf32>
    %178 = arith.truncf %169 : vector<8x32xf32> to vector<8x32xbf16>
    %cst_57 = arith.constant dense<0.000000e+00> : vector<8x128xf32>
    %179 = tpu.matmul %178, %10, %cst_57 {dimension_numbers = #tpu.dot_dimension_numbers<[1], [0], [0], [1], [0, 0, 1, 1], [], []>} : vector<8x32xbf16>, vector<32x128xbf16>, vector<8x128xf32> -> vector<8x128xf32>
    %180 = arith.addf %177, %179 : vector<8x128xf32>
    %181 = arith.negf %180 : vector<8x128xf32>
    %182 = math.exp %181 : vector<8x128xf32>
    %cst_58 = arith.constant 1.000000e+00 : f32
    %183 = vector.broadcast %cst_58 : f32 to vector<8x128xf32>
    %184 = arith.addf %183, %182 : vector<8x128xf32>
    %185 = arith.divf %183, %184 : vector<8x128xf32>
    %186 = vector.extract_strided_slice %185 {offsets = [0, 0], sizes = [8, 32], strides = [1, 1]} : vector<8x128xf32> to vector<8x32xf32>
    %187 = vector.extract_strided_slice %185 {offsets = [0, 32], sizes = [8, 32], strides = [1, 1]} : vector<8x128xf32> to vector<8x32xf32>
    %188 = vector.extract_strided_slice %185 {offsets = [0, 64], sizes = [8, 32], strides = [1, 1]} : vector<8x128xf32> to vector<8x32xf32>
    %189 = vector.extract_strided_slice %185 {offsets = [0, 96], sizes = [8, 32], strides = [1, 1]} : vector<8x128xf32> to vector<8x32xf32>
    %cst_59 = arith.constant 2.000000e+00 : f32
    %190 = vector.broadcast %cst_59 : f32 to vector<8x32xf32>
    %191 = arith.mulf %190, %189 : vector<8x32xf32>
    %cst_60 = arith.constant 1.000000e+00 : f32
    %192 = vector.broadcast %cst_60 : f32 to vector<8x32xf32>
    %193 = arith.subf %191, %192 : vector<8x32xf32>
    %194 = arith.mulf %187, %170 : vector<8x32xf32>
    %195 = arith.mulf %186, %193 : vector<8x32xf32>
    %196 = arith.addf %194, %195 : vector<8x32xf32>
    %197 = math.tanh %196 : vector<8x32xf32>
    %198 = arith.mulf %188, %197 : vector<8x32xf32>
    %199 = arith.addi %11, %c5_i32 : i32
    %c8_i32_61 = arith.constant 8 : i32
    %200 = arith.cmpi slt, %199, %c8_i32_61 : i32
    %201 = arith.select %200, %198, %169 : vector<8x32xf32>
    %202 = arith.select %200, %196, %170 : vector<8x32xf32>
    %203 = arith.truncf %201 : vector<8x32xf32> to vector<8x32xbf16>
    %204 = arith.index_cast %175 : i32 to index
    %c0_62 = arith.constant 0 : index
    %205 = vector.load %arg11[%204, %c0_62] : memref<64x32xbf16, #tpu.memory_space<vmem>>, vector<8x32xbf16>
    tpu.vector_store %arg11[%204, %c0_62], %203 {strides = array<i32>} : memref<64x32xbf16, #tpu.memory_space<vmem>>, vector<8x32xbf16>,
    %c6_i32 = arith.constant 6 : i32
    %c8_i32_63 = arith.constant 8 : i32
    %206 = arith.muli %c6_i32, %c8_i32_63 : i32
    %207 = tpu.assume_multiple %206, 8 : i32
    %208 = arith.index_cast %207 : i32 to index
    %c0_64 = arith.constant 0 : index
    %209 = vector.load %arg10[%208, %c0_64] : memref<64x128xf32, #tpu.memory_space<vmem>>, vector<8x128xf32>
    %210 = arith.truncf %201 : vector<8x32xf32> to vector<8x32xbf16>
    %cst_65 = arith.constant dense<0.000000e+00> : vector<8x128xf32>
    %211 = tpu.matmul %210, %10, %cst_65 {dimension_numbers = #tpu.dot_dimension_numbers<[1], [0], [0], [1], [0, 0, 1, 1], [], []>} : vector<8x32xbf16>, vector<32x128xbf16>, vector<8x128xf32> -> vector<8x128xf32>
    %212 = arith.addf %209, %211 : vector<8x128xf32>
    %213 = arith.negf %212 : vector<8x128xf32>
    %214 = math.exp %213 : vector<8x128xf32>
    %cst_66 = arith.constant 1.000000e+00 : f32
    %215 = vector.broadcast %cst_66 : f32 to vector<8x128xf32>
    %216 = arith.addf %215, %214 : vector<8x128xf32>
    %217 = arith.divf %215, %216 : vector<8x128xf32>
    %218 = vector.extract_strided_slice %217 {offsets = [0, 0], sizes = [8, 32], strides = [1, 1]} : vector<8x128xf32> to vector<8x32xf32>
    %219 = vector.extract_strided_slice %217 {offsets = [0, 32], sizes = [8, 32], strides = [1, 1]} : vector<8x128xf32> to vector<8x32xf32>
    %220 = vector.extract_strided_slice %217 {offsets = [0, 64], sizes = [8, 32], strides = [1, 1]} : vector<8x128xf32> to vector<8x32xf32>
    %221 = vector.extract_strided_slice %217 {offsets = [0, 96], sizes = [8, 32], strides = [1, 1]} : vector<8x128xf32> to vector<8x32xf32>
    %cst_67 = arith.constant 2.000000e+00 : f32
    %222 = vector.broadcast %cst_67 : f32 to vector<8x32xf32>
    %223 = arith.mulf %222, %221 : vector<8x32xf32>
    %cst_68 = arith.constant 1.000000e+00 : f32
    %224 = vector.broadcast %cst_68 : f32 to vector<8x32xf32>
    %225 = arith.subf %223, %224 : vector<8x32xf32>
    %226 = arith.mulf %219, %202 : vector<8x32xf32>
    %227 = arith.mulf %218, %225 : vector<8x32xf32>
    %228 = arith.addf %226, %227 : vector<8x32xf32>
    %229 = math.tanh %228 : vector<8x32xf32>
    %230 = arith.mulf %220, %229 : vector<8x32xf32>
    %231 = arith.addi %11, %c6_i32 : i32
    %c8_i32_69 = arith.constant 8 : i32
    %232 = arith.cmpi slt, %231, %c8_i32_69 : i32
    %233 = arith.select %232, %230, %201 : vector<8x32xf32>
    %234 = arith.select %232, %228, %202 : vector<8x32xf32>
    %235 = arith.truncf %233 : vector<8x32xf32> to vector<8x32xbf16>
    %236 = arith.index_cast %207 : i32 to index
    %c0_70 = arith.constant 0 : index
    %237 = vector.load %arg11[%236, %c0_70] : memref<64x32xbf16, #tpu.memory_space<vmem>>, vector<8x32xbf16>
    tpu.vector_store %arg11[%236, %c0_70], %235 {strides = array<i32>} : memref<64x32xbf16, #tpu.memory_space<vmem>>, vector<8x32xbf16>,
    %c7_i32 = arith.constant 7 : i32
    %c8_i32_71 = arith.constant 8 : i32
    %238 = arith.muli %c7_i32, %c8_i32_71 : i32
    %239 = tpu.assume_multiple %238, 8 : i32
    %240 = arith.index_cast %239 : i32 to index
    %c0_72 = arith.constant 0 : index
    %241 = vector.load %arg10[%240, %c0_72] : memref<64x128xf32, #tpu.memory_space<vmem>>, vector<8x128xf32>
    %242 = arith.truncf %233 : vector<8x32xf32> to vector<8x32xbf16>
    %cst_73 = arith.constant dense<0.000000e+00> : vector<8x128xf32>
    %243 = tpu.matmul %242, %10, %cst_73 {dimension_numbers = #tpu.dot_dimension_numbers<[1], [0], [0], [1], [0, 0, 1, 1], [], []>} : vector<8x32xbf16>, vector<32x128xbf16>, vector<8x128xf32> -> vector<8x128xf32>
    %244 = arith.addf %241, %243 : vector<8x128xf32>
    %245 = arith.negf %244 : vector<8x128xf32>
    %246 = math.exp %245 : vector<8x128xf32>
    %cst_74 = arith.constant 1.000000e+00 : f32
    %247 = vector.broadcast %cst_74 : f32 to vector<8x128xf32>
    %248 = arith.addf %247, %246 : vector<8x128xf32>
    %249 = arith.divf %247, %248 : vector<8x128xf32>
    %250 = vector.extract_strided_slice %249 {offsets = [0, 0], sizes = [8, 32], strides = [1, 1]} : vector<8x128xf32> to vector<8x32xf32>
    %251 = vector.extract_strided_slice %249 {offsets = [0, 32], sizes = [8, 32], strides = [1, 1]} : vector<8x128xf32> to vector<8x32xf32>
    %252 = vector.extract_strided_slice %249 {offsets = [0, 64], sizes = [8, 32], strides = [1, 1]} : vector<8x128xf32> to vector<8x32xf32>
    %253 = vector.extract_strided_slice %249 {offsets = [0, 96], sizes = [8, 32], strides = [1, 1]} : vector<8x128xf32> to vector<8x32xf32>
    %cst_75 = arith.constant 2.000000e+00 : f32
    %254 = vector.broadcast %cst_75 : f32 to vector<8x32xf32>
    %255 = arith.mulf %254, %253 : vector<8x32xf32>
    %cst_76 = arith.constant 1.000000e+00 : f32
    %256 = vector.broadcast %cst_76 : f32 to vector<8x32xf32>
    %257 = arith.subf %255, %256 : vector<8x32xf32>
    %258 = arith.mulf %251, %234 : vector<8x32xf32>
    %259 = arith.mulf %250, %257 : vector<8x32xf32>
    %260 = arith.addf %258, %259 : vector<8x32xf32>
    %261 = math.tanh %260 : vector<8x32xf32>
    %262 = arith.mulf %252, %261 : vector<8x32xf32>
    %263 = arith.addi %11, %c7_i32 : i32
    %c8_i32_77 = arith.constant 8 : i32
    %264 = arith.cmpi slt, %263, %c8_i32_77 : i32
    %265 = arith.select %264, %262, %233 : vector<8x32xf32>
    %266 = arith.select %264, %260, %234 : vector<8x32xf32>
    %267 = arith.truncf %265 : vector<8x32xf32> to vector<8x32xbf16>
    %268 = arith.index_cast %239 : i32 to index
    %c0_78 = arith.constant 0 : index
    %269 = vector.load %arg11[%268, %c0_78] : memref<64x32xbf16, #tpu.memory_space<vmem>>, vector<8x32xbf16>
    tpu.vector_store %arg11[%268, %c0_78], %267 {strides = array<i32>} : memref<64x32xbf16, #tpu.memory_space<vmem>>, vector<8x32xbf16>,
    %c8_i32_79 = arith.constant 8 : i32
    %c0_80 = arith.constant 0 : index
    %c0_81 = arith.constant 0 : index
    %270 = vector.load %arg12[%c0_80, %c0_81] : memref<8x32xf32, #tpu.memory_space<vmem>>, vector<8x32xf32>
    tpu.vector_store %arg12[%c0_80, %c0_81], %265 {strides = array<i32>} : memref<8x32xf32, #tpu.memory_space<vmem>>, vector<8x32xf32>,
    %c0_82 = arith.constant 0 : index
    %c0_83 = arith.constant 0 : index
    %271 = vector.load %arg13[%c0_82, %c0_83] : memref<8x32xf32, #tpu.memory_space<vmem>>, vector<8x32xf32>
    tpu.vector_store %arg13[%c0_82, %c0_83], %266 {strides = array<i32>} : memref<8x32xf32, #tpu.memory_space<vmem>>, vector<8x32xf32>,
    %c0_84 = arith.constant 0 : index
    %c0_85 = arith.constant 0 : index
    %272 = vector.load %arg11[%c0_84, %c0_85] : memref<64x32xbf16, #tpu.memory_space<vmem>>, vector<64x32xbf16>
    %c0_86 = arith.constant 0 : index
    %c0_87 = arith.constant 0 : index
    %273 = vector.load %arg5[%c0_86, %c0_87] : memref<32x128xbf16, #tpu.memory_space<vmem>>, vector<32x128xbf16>
    %cst_88 = arith.constant dense<0.000000e+00> : vector<64x128xf32>
    %274 = tpu.matmul %272, %273, %cst_88 {dimension_numbers = #tpu.dot_dimension_numbers<[1], [0], [0], [1], [0, 0, 1, 1], [], []>} : vector<64x32xbf16>, vector<32x128xbf16>, vector<64x128xf32> -> vector<64x128xf32>
    %c0_89 = arith.constant 0 : index
    %c0_90 = arith.constant 0 : index
    %275 = vector.load %arg6[%c0_89, %c0_90] : memref<1x128xf32, #tpu.memory_space<vmem>>, vector<1x128xf32>
    %276 = vector.broadcast %275 : vector<1x128xf32> to vector<64x128xf32>
    %277 = arith.addf %274, %276 : vector<64x128xf32>
    %c0_91 = arith.constant 0 : index
    %c0_92 = arith.constant 0 : index
    %278 = vector.load %arg7[%c0_91, %c0_92] : memref<64x128xf32, #tpu.memory_space<vmem>>, vector<64x128xf32>
    tpu.vector_store %arg7[%c0_91, %c0_92], %277 {strides = array<i32>} : memref<64x128xf32, #tpu.memory_space<vmem>>, vector<64x128xf32>,
    %c0_i32_93 = arith.constant 0 : i32
    %279 = arith.cmpi eq, %arg0, %c0_i32_93 : i32
    %280 = arith.extui %279 : i1 to i32
    %c0_i32_94 = arith.constant 0 : i32
    %281 = arith.cmpi ne, %280, %c0_i32_94 : i32
    scf.if %281 {
      %c0_95 = arith.constant 0 : index
      %c0_96 = arith.constant 0 : index
      %282 = vector.load %arg8[%c0_95, %c0_96] : memref<8x32xf32, #tpu.memory_space<vmem>>, vector<8x32xf32>
      tpu.vector_store %arg8[%c0_95, %c0_96], %265 {strides = array<i32>} : memref<8x32xf32, #tpu.memory_space<vmem>>, vector<8x32xf32>,
      %c0_97 = arith.constant 0 : index
      %c0_98 = arith.constant 0 : index
      %283 = vector.load %arg9[%c0_97, %c0_98] : memref<8x32xf32, #tpu.memory_space<vmem>>, vector<8x32xf32>
      tpu.vector_store %arg9[%c0_97, %c0_98], %266 {strides = array<i32>} : memref<8x32xf32, #tpu.memory_space<vmem>>, vector<8x32xf32>,
    } else {
    }
    return
  }
  func.func @transform_0(%arg0: i32) -> (i32, i32) {
    %c0_i32 = arith.constant 0 : i32
    %c0_i32_0 = arith.constant 0 : i32
    return %arg0, %c0_i32 : i32, i32
  }
  func.func @transform_1(%arg0: i32) -> (i32, i32) {
    %c0_i32 = arith.constant 0 : i32
    %c0_i32_0 = arith.constant 0 : i32
    %c0_i32_1 = arith.constant 0 : i32
    return %c0_i32, %c0_i32_0 : i32, i32
  }
  func.func @transform_2(%arg0: i32) -> (i32, i32) {
    %c0_i32 = arith.constant 0 : i32
    %c0_i32_0 = arith.constant 0 : i32
    %c0_i32_1 = arith.constant 0 : i32
    return %c0_i32, %c0_i32_0 : i32, i32
  }
  func.func @transform_3(%arg0: i32) -> (i32, i32) {
    %c0_i32 = arith.constant 0 : i32
    %c0_i32_0 = arith.constant 0 : i32
    %c0_i32_1 = arith.constant 0 : i32
    return %c0_i32, %c0_i32_0 : i32, i32
  }
  func.func @transform_4(%arg0: i32) -> (i32, i32) {
    %c0_i32 = arith.constant 0 : i32
    %c0_i32_0 = arith.constant 0 : i32
    %c0_i32_1 = arith.constant 0 : i32
    return %c0_i32, %c0_i32_0 : i32, i32
  }
  func.func @transform_5(%arg0: i32) -> (i32, i32) {
    %c0_i32 = arith.constant 0 : i32
    %c0_i32_0 = arith.constant 0 : i32
    %c0_i32_1 = arith.constant 0 : i32
    return %c0_i32, %c0_i32_0 : i32, i32
  }
  func.func @transform_6(%arg0: i32) -> (i32, i32) {
    %c0_i32 = arith.constant 0 : i32
    %c0_i32_0 = arith.constant 0 : i32
    return %arg0, %c0_i32 : i32, i32
  }
  func.func @transform_7(%arg0: i32) -> (i32, i32) {
    %c0_i32 = arith.constant 0 : i32
    %c0_i32_0 = arith.constant 0 : i32
    %c0_i32_1 = arith.constant 0 : i32
    return %c0_i32, %c0_i32_0 : i32, i32
  }
  func.func @transform_8(%arg0: i32) -> (i32, i32) {
    %c0_i32 = arith.constant 0 : i32
    %c0_i32_0 = arith.constant 0 : i32
    %c0_i32_1 = arith.constant 0 : i32
    return %c0_i32, %c0_i32_0 : i32, i32
  }
}

</mosaic_0001>

<llo_original>
// kernel: tpu_custom_call.1
$region0: #{tpu_custom_call.1}
  #allocation0 [shape = 'u32[]', space=smem, size = 0x4, offset = 0x4, fixed_abs, tag = 'smem constant byte address 0x4 - core index']
  #allocation1 [shape = 'u32[72,128]{1,0:T(1,128)}', space=vmem, size = 0x9000, scoped, tag = 'internal scratch']
  #allocation2 [shape = 'f32[64,128]{1,0:T(8,128)}', space=vmem, size = 0x8000, scoped, tag = 'scratch operand']
  #allocation3 [shape = 'bf16[64,32]{1,0:T(8,128)(2,1)}', space=vmem, size = 0x4000, scoped, tag = 'scratch operand']
  #allocation4 [shape = 'f32[8,32]{1,0:T(8,128)}', space=vmem, size = 0x1000, scoped, tag = 'scratch operand']
  #allocation5 [shape = 'f32[8,32]{1,0:T(8,128)}', space=vmem, size = 0x1000, scoped, tag = 'scratch operand']
  %s0 = inlined_call_operand.vmem [shape: bf16[64,16], index: 0, kind: input, shape index: {}]
  %s1 = inlined_call_operand.vmem [shape: bf16[16,128], index: 1, kind: input, shape index: {}]
  %s2 = inlined_call_operand.vmem [shape: bf16[32,128], index: 2, kind: input, shape index: {}]
  %s3 = inlined_call_operand.vmem [shape: f32[1,128], index: 3, kind: input, shape index: {}]
  %s4 = inlined_call_operand.vmem [shape: bf16[32,128], index: 4, kind: input, shape index: {}]
  %s5 = inlined_call_operand.vmem [shape: f32[1,128], index: 5, kind: input, shape index: {}]
  %s6 = inlined_call_operand.hbm [shape: f32[64,128], index: 6, kind: output, shape index: {0}]
  %s7 = inlined_call_operand.hbm [shape: f32[8,32], index: 7, kind: output, shape index: {1}]
  %s8 = inlined_call_operand.hbm [shape: f32[8,32], index: 8, kind: output, shape index: {2}]
  %9 = xla_tuple %s6, %s7, %s8
  %s10 = sld [smem:[#allocation0]]
  $region58: #{tpu_custom_call.1} parent=0
    _
  %s12 = ssub.s32 1, %s10
  %s13 = scalar_select 0, %s12, %s10
  $region1: #{tpu_custom_call.1} parent=0
    #allocation6 [shape = 'u8[32768]{0}', space=vmem, size = 0x8000, scoped, tag = 'output window, operand 0, single buffered']
    #allocation7 [shape = 's32[1]{0}', space=sflag, size = 0x4, scoped, tag = 'scoped memory for tpu_custom_call.1']
    #allocation8 [shape = 'u8[4096]{0}', space=vmem, size = 0x1000, scoped, tag = 'output window, operand 1, single buffered']
    #allocation9 [shape = 's32[1]{0}', space=sflag, size = 0x4, scoped, tag = 'scoped memory for tpu_custom_call.1']
    #allocation10 [shape = 'u8[4096]{0}', space=vmem, size = 0x1000, scoped, tag = 'output window, operand 2, single buffered']
    %14 = vsyncpa [#allocation7], 0
    %15 = vsyncpa [#allocation9], 0
    // Predicated region
    $region2: #{tpu_custom_call.1} parent=1 // pred_check
      _
    $region3: #{tpu_custom_call.1} parent=1 // pred_check_branch
      %17 = sbr.rel (0) target = $region5
    $region4: #{tpu_custom_call.1} parent=1 // pred_region
      _
    $region5: #{tpu_custom_call.1} parent=1 // pred_fallthru
      _
    // Predicated region
    $region6: #{tpu_custom_call.1} parent=1 // pred_check
      _
    $region7: #{tpu_custom_call.1} parent=1 // pred_check_branch
      %19 = sbr.rel (0) target = $region9
    $region8: #{tpu_custom_call.1} parent=1 // pred_region
      _
    $region9: #{tpu_custom_call.1} parent=1 // pred_fallthru
      _
    // Predicated region
    $region10: #{tpu_custom_call.1} parent=1 // pred_check
      _
    $region11: #{tpu_custom_call.1} parent=1 // pred_check_branch
      %21 = sbr.rel (0) target = $region13
    $region12: #{tpu_custom_call.1} parent=1 // pred_region
      _
    $region13: #{tpu_custom_call.1} parent=1 // pred_fallthru
      _
    // Predicated region
    $region14: #{tpu_custom_call.1} parent=1 // pred_check
      _
    $region15: #{tpu_custom_call.1} parent=1 // pred_check_branch
      %23 = sbr.rel (0) target = $region17
    $region16: #{tpu_custom_call.1} parent=1 // pred_region
      _
    $region17: #{tpu_custom_call.1} parent=1 // pred_fallthru
      _
    // Predicated region
    $region18: #{tpu_custom_call.1} parent=1 // pred_check
      _
    $region19: #{tpu_custom_call.1} parent=1 // pred_check_branch
      %25 = sbr.rel (0) target = $region21
    $region20: #{tpu_custom_call.1} parent=1 // pred_region
      _
    $region21: #{tpu_custom_call.1} parent=1 // pred_fallthru
      _
    // Predicated region
    $region22: #{tpu_custom_call.1} parent=1 // pred_check
      _
    $region23: #{tpu_custom_call.1} parent=1 // pred_check_branch
      %27 = sbr.rel (0) target = $region25
    $region24: #{tpu_custom_call.1} parent=1 // pred_region
      _
    $region25: #{tpu_custom_call.1} parent=1 // pred_fallthru
      _
    %p29 = scmp.eq.s32.totalorder 0, 0
    // Predicated region
    $region26: #{tpu_custom_call.1} parent=1 // pred_check
      %p30 = pneg %p29
    $region27: #{tpu_custom_call.1} parent=1 // pred_check_branch
      %32 = sbr.rel (%p30) target = $region29
    $region28: #{tpu_custom_call.1} parent=1 // pred_region
      %vm33 = vcmask 261120
      %34 = vst.msk [vmem:[#allocation4] sm:$0xff] %vm33, 0.0
      %35 = vst.msk [vmem:[#allocation5] sm:$0xff] %vm33, 0.0
    $region29: #{tpu_custom_call.1} parent=1 // pred_fallthru
      _
    %v36 = vld [vmem:[%s0] sm:$0xf]
    %v37 = vld [vmem:[%s0 + $0x4] sm:$0xf]
    %v38 = vld [vmem:[%s0 + $0x8] sm:$0xf]
    %v39 = vld [vmem:[%s0 + $0xc] sm:$0xf]
    %v40 = vld [vmem:[%s0 + $0x10] sm:$0xf]
    %v41 = vld [vmem:[%s0 + $0x14] sm:$0xf]
    %v42 = vld [vmem:[%s0 + $0x18] sm:$0xf]
    %v43 = vld [vmem:[%s0 + $0x1c] sm:$0xf]
    %v44 = vld [vmem:[%s1] sm:$0xf]
    %v45 = vld [vmem:[%s1 + $0x4] sm:$0xf]
    %v46 = vld [vmem:[%s3] sm:$0x1]
    %v48 = vperm.slane %v46, 0
    %v58 = vunpack.c.l.b16 %v36
    %v59 = vunpack.c.l.b16 %v37
    %v60 = vunpack.c.l.b16 %v38
    %v61 = vunpack.c.l.b16 %v39
    %v62 = vunpack.c.l.b16 %v40
    %v63 = vunpack.c.l.b16 %v41
    %v64 = vunpack.c.l.b16 %v42
    %v65 = vunpack.c.l.b16 %v43
    %v66 = vpack.c.b16 %v59, %v58
    %v67 = vpack.c.b16 %v61, %v60
    %v68 = vpack.c.b16 %v63, %v62
    %v69 = vpack.c.b16 %v65, %v64
    %v72 = vunpack.c.l.b16 %v44
    %v73 = vunpack.c.l.b16 %v45
    %v74 = vpack.c.b16 %v73, %v72
    %vm76 = vcmask 130048
    %v78 = vsel %vm76, %v66, 0
    %v81 = vsel %vm76, %v67, 0
    %v84 = vsel %vm76, %v68, 0
    %v87 = vsel %vm76, %v69, 0
    %89 = vmatpush.bf16.msra.mxu0 0
    %90 = vmatpush.bf16.msra.mxu0 0
    %91 = vmatpush.bf16.msra.mxu0 0
    %92 = vmatpush.bf16.msra.mxu0 0
    %93 = vmatpush.bf16.msra.mxu0 0
    %94 = vmatpush.bf16.msra.mxu0 0
    %95 = vmatpush.bf16.msra.mxu0 0
    %96 = vmatpush.bf16.msra.mxu0 %v74
    %97 = vmatmul.bf16.gmra.mxu0 %v78
    %v98 = vpop.f32.mrf.mxu0
    %v99 = vadd.f32 %v48, %v98
    %v100 = vpop.f32.mrf.mxu0
    %v101 = vadd.f32 %v48, %v100
    %102 = vmatmul.bf16.gmra.mxu0 %v81
    %v103 = vpop.f32.mrf.mxu0
    %v104 = vadd.f32 %v48, %v103
    %v105 = vpop.f32.mrf.mxu0
    %v106 = vadd.f32 %v48, %v105
    %107 = vmatmul.bf16.gmra.mxu0 %v84
    %v108 = vpop.f32.mrf.mxu0
    %v109 = vadd.f32 %v48, %v108
    %v110 = vpop.f32.mrf.mxu0
    %v111 = vadd.f32 %v48, %v110
    %112 = vmatmul.bf16.gmra.mxu0 %v87
    %v113 = vpop.f32.mrf.mxu0
    %v114 = vadd.f32 %v48, %v113
    %v115 = vpop.f32.mrf.mxu0
    %v116 = vadd.f32 %v48, %v115
    %117 = vdwg.mxu0
    %118 = vst [vmem:[#allocation2] sm:$0xff] %v99
    %119 = vst [vmem:[#allocation2 + $0x8] sm:$0xff] %v101
    %120 = vst [vmem:[#allocation2 + $0x10] sm:$0xff] %v104
    %121 = vst [vmem:[#allocation2 + $0x18] sm:$0xff] %v106
    %122 = vst [vmem:[#allocation2 + $0x20] sm:$0xff] %v109
    %123 = vst [vmem:[#allocation2 + $0x28] sm:$0xff] %v111
    %124 = vst [vmem:[#allocation2 + $0x30] sm:$0xff] %v114
    %125 = vst [vmem:[#allocation2 + $0x38] sm:$0xff] %v116
    %v126 = vld [vmem:[%s2] sm:$0xf]
    %v127 = vld [vmem:[%s2 + $0x4] sm:$0xf]
    %v128 = vld [vmem:[%s2 + $0x8] sm:$0xf]
    %v129 = vld [vmem:[%s2 + $0xc] sm:$0xf]
    %s130 = smul.u32 0, 8
    %v131 = vld [vmem:[#allocation4] sm:$0xff]
    %v132 = vld [vmem:[#allocation5] sm:$0xff]
    %v133 = vld [vmem:[#allocation2] sm:$0xff]
    %v134 = vpack.c.bf16 %v131, %v131
    %v139 = vunpack.c.l.b16 %v126
    %v140 = vunpack.c.l.b16 %v127
    %v141 = vunpack.c.l.b16 %v128
    %v142 = vunpack.c.l.b16 %v129
    %v143 = vpack.c.b16 %v140, %v139
    %v144 = vpack.c.b16 %v142, %v141
    %vm147 = vcmask 261120
    %v149 = vsel %vm147, %v134, 0
    %151 = vmatpush.bf16.msra.mxu0 0
    %152 = vmatpush.bf16.msra.mxu0 0
    %153 = vmatpush.bf16.msra.mxu0 0
    %154 = vmatpush.bf16.msra.mxu0 0
    %155 = vmatpush.bf16.msra.mxu0 0
    %156 = vmatpush.bf16.msra.mxu0 0
    %157 = vmatpush.bf16.msra.mxu0 %v144
    %158 = vmatpush.bf16.msra.mxu0 %v143
    %159 = vmatmul.bf16.gmra.mxu0 %v149
    %v160 = vpop.f32.mrf.mxu0
    %v161 = vadd.f32 0.0, %v160
    %v162 = vpop.f32.mrf.mxu0
    %163 = vdwg.mxu0
    %v164 = vadd.f32 %v133, %v161
    %v165 = vxor.u32 %v164, 2147483648
    %v166 = vmul.f32 %v165, 1.442695
    %v167 = vpow.pop %v166
    %v168 = vadd.f32 %v167, 1.0
    %v169 = vrcp.pop %v168
    %v170 = vmul.f32 %v168, %v169
    %v171 = vsub.f32 1.0, %v170
    %v172 = vmul.f32 %v169, %v171
    %v173 = vadd.f32 %v169, %v172
    %vm174 = vweird.f32 %v168
    %vm175 = vweird.f32 %v169
    %vm176 = vmor %vm174, %vm175
    %v177 = vsel %vm176, %v169, %v173
    %v178 = vand.u32 2147483647, %v168
    %vm179 = vcmp.eq.f32.partialorder %v178, 8.507059e+37
    %v180 = vand.u32 %v168, 2147483648
    %v181 = vor.u32 1.1754944e-38, %v180
    %v182 = vsel %vm179, %v181, %v177
    %v183 = vmul.f32 1.0, %v182
    %v184 = vmul.f32 %v183, 2.0
    %v185 = vsub.f32 %v184, 1.0
    %187 = vrot.lane.b32.xlu0 %v132, 32
    %v188 = vpop.permute.xlu0 %187
    %v190 = vmul.f32 %v183, %v188
    %192 = vrot.lane.b32.xlu0 %v185, 32
    %v193 = vpop.permute.xlu0 %192
    %v195 = vmul.f32 %v183, %v193
    %197 = vrot.lane.b32.xlu0 %v195, 32
    %v198 = vpop.permute.xlu0 %197
    %v200 = vadd.f32 %v190, %v198
    %v201 = vtanh.pop %v200
    %203 = vrot.lane.b32.xlu0 %v201, 32
    %v204 = vpop.permute.xlu0 %203
    %v206 = vmul.f32 %v183, %v204
    %p207 = scmp.lt.s32.totalorder %s130, 8
    %s208 = scalar_select %p207, 1, 0
    %v209 = vstv %s208
    %vm210 = vcmp.eq.s32.totalorder %v209, 1
    %212 = vrot.lane.b32.xlu0 %v131, 64
    %v213 = vpop.permute.xlu0 %212
    %v215 = vsel %vm210, %v206, %v213
    %v216 = vsel %vm210, %v200, %v188
    %v217 = vpack.c.bf16 %v215, %v215
    %219 = vrot.lane.b32.xlu0 %v217, 64
    %v220 = vpop.permute.xlu0 %219
    %vm222 = vcmask 257024
    %223 = vst.msk [vmem:[#allocation3] sm:$0xf] %vm222, %v220
    %s224 = scalar_lea.vmem [#allocation2], 8
    %v225 = vld [vmem:[%s224] sm:$0xff]
    %v226 = vunpack.c.l.b16 %v217
    %v227 = vpack.c.b16 %v226, %v226
    %228 = vrot.lane.b32.xlu0 %v227, 64
    %v229 = vpop.permute.xlu0 %228
    %v231 = vsel %vm147, %v229, 0
    %233 = vmatpush.bf16.msra.mxu0 0
    %234 = vmatpush.bf16.msra.mxu0 0
    %235 = vmatpush.bf16.msra.mxu0 0
    %236 = vmatpush.bf16.msra.mxu0 0
    %237 = vmatpush.bf16.msra.mxu0 0
    %238 = vmatpush.bf16.msra.mxu0 0
    %239 = vmatpush.bf16.msra.mxu0 %v144
    %240 = vmatpush.bf16.msra.mxu0 %v143
    %241 = vmatmul.bf16.gmra.mxu0 %v231
    %v242 = vpop.f32.mrf.mxu0
    %v243 = vadd.f32 0.0, %v242
    %v244 = vpop.f32.mrf.mxu0
    %245 = vdwg.mxu0
    %v246 = vadd.f32 %v225, %v243
    %v247 = vxor.u32 %v246, 2147483648
    %v248 = vmul.f32 %v247, 1.442695
    %v249 = vpow.pop %v248
    %v250 = vadd.f32 %v249, 1.0
    %v251 = vrcp.pop %v250
    %v252 = vmul.f32 %v250, %v251
    %v253 = vsub.f32 1.0, %v252
    %v254 = vmul.f32 %v251, %v253
    %v255 = vadd.f32 %v251, %v254
    %vm256 = vweird.f32 %v250
    %vm257 = vweird.f32 %v251
    %vm258 = vmor %vm256, %vm257
    %v259 = vsel %vm258, %v251, %v255
    %v260 = vand.u32 2147483647, %v250
    %vm261 = vcmp.eq.f32.partialorder %v260, 8.507059e+37
    %v262 = vand.u32 %v250, 2147483648
    %v263 = vor.u32 1.1754944e-38, %v262
    %v264 = vsel %vm261, %v263, %v259
    %v265 = vmul.f32 1.0, %v264
    %v266 = vmul.f32 %v265, 2.0
    %v267 = vsub.f32 %v266, 1.0
    %v268 = vmul.f32 %v265, %v216
    %270 = vrot.lane.b32.xlu0 %v267, 32
    %v271 = vpop.permute.xlu0 %270
    %v273 = vmul.f32 %v265, %v271
    %275 = vrot.lane.b32.xlu0 %v273, 32
    %v276 = vpop.permute.xlu0 %275
    %v278 = vadd.f32 %v268, %v276
    %v279 = vtanh.pop %v278
    %281 = vrot.lane.b32.xlu0 %v279, 32
    %v282 = vpop.permute.xlu0 %281
    %v284 = vmul.f32 %v265, %v282
    %s285 = sadd.s32 %s130, 1
    %p286 = scmp.lt.s32.totalorder %s285, 8
    %s287 = scalar_select %p286, 1, 0
    %v288 = vstv %s287
    %vm289 = vcmp.eq.s32.totalorder %v288, 1
    %v290 = vsel %vm289, %v284, %v215
    %v291 = vsel %vm289, %v278, %v216
    %v292 = vpack.c.bf16 %v290, %v290
    %294 = vrot.lane.b32.xlu0 %v292, 64
    %v295 = vpop.permute.xlu0 %294
    %s297 = scalar_lea.vmem [#allocation3], 4
    %298 = vst.msk [vmem:[%s297] sm:$0xf] %vm222, %v295
    %s299 = scalar_lea.vmem [#allocation2], 16
    %v300 = vld [vmem:[%s299] sm:$0xff]
    %v301 = vunpack.c.l.b16 %v292
    %v302 = vpack.c.b16 %v301, %v301
    %303 = vrot.lane.b32.xlu0 %v302, 64
    %v304 = vpop.permute.xlu0 %303
    %v306 = vsel %vm147, %v304, 0
    %308 = vmatpush.bf16.msra.mxu0 0
    %309 = vmatpush.bf16.msra.mxu0 0
    %310 = vmatpush.bf16.msra.mxu0 0
    %311 = vmatpush.bf16.msra.mxu0 0
    %312 = vmatpush.bf16.msra.mxu0 0
    %313 = vmatpush.bf16.msra.mxu0 0
    %314 = vmatpush.bf16.msra.mxu0 %v144
    %315 = vmatpush.bf16.msra.mxu0 %v143
    %316 = vmatmul.bf16.gmra.mxu0 %v306
    %v317 = vpop.f32.mrf.mxu0
    %v318 = vadd.f32 0.0, %v317
    %v319 = vpop.f32.mrf.mxu0
    %320 = vdwg.mxu0
    %v321 = vadd.f32 %v300, %v318
    %v322 = vxor.u32 %v321, 2147483648
    %v323 = vmul.f32 %v322, 1.442695
    %v324 = vpow.pop %v323
    %v325 = vadd.f32 %v324, 1.0
    %v326 = vrcp.pop %v325
    %v327 = vmul.f32 %v325, %v326
    %v328 = vsub.f32 1.0, %v327
    %v329 = vmul.f32 %v326, %v328
    %v330 = vadd.f32 %v326, %v329
    %vm331 = vweird.f32 %v325
    %vm332 = vweird.f32 %v326
    %vm333 = vmor %vm331, %vm332
    %v334 = vsel %vm333, %v326, %v330
    %v335 = vand.u32 2147483647, %v325
    %vm336 = vcmp.eq.f32.partialorder %v335, 8.507059e+37
    %v337 = vand.u32 %v325, 2147483648
    %v338 = vor.u32 1.1754944e-38, %v337
    %v339 = vsel %vm336, %v338, %v334
    %v340 = vmul.f32 1.0, %v339
    %v341 = vmul.f32 %v340, 2.0
    %v342 = vsub.f32 %v341, 1.0
    %v343 = vmul.f32 %v340, %v291
    %345 = vrot.lane.b32.xlu0 %v342, 32
    %v346 = vpop.permute.xlu0 %345
    %v348 = vmul.f32 %v340, %v346
    %350 = vrot.lane.b32.xlu0 %v348, 32
    %v351 = vpop.permute.xlu0 %350
    %v353 = vadd.f32 %v343, %v351
    %v354 = vtanh.pop %v353
    %356 = vrot.lane.b32.xlu0 %v354, 32
    %v357 = vpop.permute.xlu0 %356
    %v359 = vmul.f32 %v340, %v357
    %s360 = sadd.s32 %s130, 2
    %p361 = scmp.lt.s32.totalorder %s360, 8
    %s362 = scalar_select %p361, 1, 0
    %v363 = vstv %s362
    %vm364 = vcmp.eq.s32.totalorder %v363, 1
    %v365 = vsel %vm364, %v359, %v290
    %v366 = vsel %vm364, %v353, %v291
    %v367 = vpack.c.bf16 %v365, %v365
    %369 = vrot.lane.b32.xlu0 %v367, 64
    %v370 = vpop.permute.xlu0 %369
    %s372 = scalar_lea.vmem [#allocation3], 8
    %373 = vst.msk [vmem:[%s372] sm:$0xf] %vm222, %v370
    %s374 = scalar_lea.vmem [#allocation2], 24
    %v375 = vld [vmem:[%s374] sm:$0xff]
    %v376 = vunpack.c.l.b16 %v367
    %v377 = vpack.c.b16 %v376, %v376
    %378 = vrot.lane.b32.xlu0 %v377, 64
    %v379 = vpop.permute.xlu0 %378
    %v381 = vsel %vm147, %v379, 0
    %383 = vmatpush.bf16.msra.mxu0 0
    %384 = vmatpush.bf16.msra.mxu0 0
    %385 = vmatpush.bf16.msra.mxu0 0
    %386 = vmatpush.bf16.msra.mxu0 0
    %387 = vmatpush.bf16.msra.mxu0 0
    %388 = vmatpush.bf16.msra.mxu0 0
    %389 = vmatpush.bf16.msra.mxu0 %v144
    %390 = vmatpush.bf16.msra.mxu0 %v143
    %391 = vmatmul.bf16.gmra.mxu0 %v381
    %v392 = vpop.f32.mrf.mxu0
    %v393 = vadd.f32 0.0, %v392
    %v394 = vpop.f32.mrf.mxu0
    %395 = vdwg.mxu0
    %v396 = vadd.f32 %v375, %v393
    %v397 = vxor.u32 %v396, 2147483648
    %v398 = vmul.f32 %v397, 1.442695
    %v399 = vpow.pop %v398
    %v400 = vadd.f32 %v399, 1.0
    %v401 = vrcp.pop %v400
    %v402 = vmul.f32 %v400, %v401
    %v403 = vsub.f32 1.0, %v402
    %v404 = vmul.f32 %v401, %v403
    %v405 = vadd.f32 %v401, %v404
    %vm406 = vweird.f32 %v400
    %vm407 = vweird.f32 %v401
    %vm408 = vmor %vm406, %vm407
    %v409 = vsel %vm408, %v401, %v405
    %v410 = vand.u32 2147483647, %v400
    %vm411 = vcmp.eq.f32.partialorder %v410, 8.507059e+37
    %v412 = vand.u32 %v400, 2147483648
    %v413 = vor.u32 1.1754944e-38, %v412
    %v414 = vsel %vm411, %v413, %v409
    %v415 = vmul.f32 1.0, %v414
    %v416 = vmul.f32 %v415, 2.0
    %v417 = vsub.f32 %v416, 1.0
    %v418 = vmul.f32 %v415, %v366
    %420 = vrot.lane.b32.xlu0 %v417, 32
    %v421 = vpop.permute.xlu0 %420
    %v423 = vmul.f32 %v415, %v421
    %425 = vrot.lane.b32.xlu0 %v423, 32
    %v426 = vpop.permute.xlu0 %425
    %v428 = vadd.f32 %v418, %v426
    %v429 = vtanh.pop %v428
    %431 = vrot.lane.b32.xlu0 %v429, 32
    %v432 = vpop.permute.xlu0 %431
    %v434 = vmul.f32 %v415, %v432
    %s435 = sadd.s32 %s130, 3
    %p436 = scmp.lt.s32.totalorder %s435, 8
    %s437 = scalar_select %p436, 1, 0
    %v438 = vstv %s437
    %vm439 = vcmp.eq.s32.totalorder %v438, 1
    %v440 = vsel %vm439, %v434, %v365
    %v441 = vsel %vm439, %v428, %v366
    %v442 = vpack.c.bf16 %v440, %v440
    %444 = vrot.lane.b32.xlu0 %v442, 64
    %v445 = vpop.permute.xlu0 %444
    %s447 = scalar_lea.vmem [#allocation3], 12
    %448 = vst.msk [vmem:[%s447] sm:$0xf] %vm222, %v445
    %s449 = scalar_lea.vmem [#allocation2], 32
    %v450 = vld [vmem:[%s449] sm:$0xff]
    %v451 = vunpack.c.l.b16 %v442
    %v452 = vpack.c.b16 %v451, %v451
    %453 = vrot.lane.b32.xlu0 %v452, 64
    %v454 = vpop.permute.xlu0 %453
    %v456 = vsel %vm147, %v454, 0
    %458 = vmatpush.bf16.msra.mxu0 0
    %459 = vmatpush.bf16.msra.mxu0 0
    %460 = vmatpush.bf16.msra.mxu0 0
    %461 = vmatpush.bf16.msra.mxu0 0
    %462 = vmatpush.bf16.msra.mxu0 0
    %463 = vmatpush.bf16.msra.mxu0 0
    %464 = vmatpush.bf16.msra.mxu0 %v144
    %465 = vmatpush.bf16.msra.mxu0 %v143
    %466 = vmatmul.bf16.gmra.mxu0 %v456
    %v467 = vpop.f32.mrf.mxu0
    %v468 = vadd.f32 0.0, %v467
    %v469 = vpop.f32.mrf.mxu0
    %470 = vdwg.mxu0
    %v471 = vadd.f32 %v450, %v468
    %v472 = vxor.u32 %v471, 2147483648
    %v473 = vmul.f32 %v472, 1.442695
    %v474 = vpow.pop %v473
    %v475 = vadd.f32 %v474, 1.0
    %v476 = vrcp.pop %v475
    %v477 = vmul.f32 %v475, %v476
    %v478 = vsub.f32 1.0, %v477
    %v479 = vmul.f32 %v476, %v478
    %v480 = vadd.f32 %v476, %v479
    %vm481 = vweird.f32 %v475
    %vm482 = vweird.f32 %v476
    %vm483 = vmor %vm481, %vm482
    %v484 = vsel %vm483, %v476, %v480
    %v485 = vand.u32 2147483647, %v475
    %vm486 = vcmp.eq.f32.partialorder %v485, 8.507059e+37
    %v487 = vand.u32 %v475, 2147483648
    %v488 = vor.u32 1.1754944e-38, %v487
    %v489 = vsel %vm486, %v488, %v484
    %v490 = vmul.f32 1.0, %v489
    %v491 = vmul.f32 %v490, 2.0
    %v492 = vsub.f32 %v491, 1.0
    %v493 = vmul.f32 %v490, %v441
    %495 = vrot.lane.b32.xlu0 %v492, 32
    %v496 = vpop.permute.xlu0 %495
    %v498 = vmul.f32 %v490, %v496
    %500 = vrot.lane.b32.xlu0 %v498, 32
    %v501 = vpop.permute.xlu0 %500
    %v503 = vadd.f32 %v493, %v501
    %v504 = vtanh.pop %v503
    %506 = vrot.lane.b32.xlu0 %v504, 32
    %v507 = vpop.permute.xlu0 %506
    %v509 = vmul.f32 %v490, %v507
    %s510 = sadd.s32 %s130, 4
    %p511 = scmp.lt.s32.totalorder %s510, 8
    %s512 = scalar_select %p511, 1, 0
    %v513 = vstv %s512
    %vm514 = vcmp.eq.s32.totalorder %v513, 1
    %v515 = vsel %vm514, %v509, %v440
    %v516 = vsel %vm514, %v503, %v441
    %v517 = vpack.c.bf16 %v515, %v515
    %519 = vrot.lane.b32.xlu0 %v517, 64
    %v520 = vpop.permute.xlu0 %519
    %s522 = scalar_lea.vmem [#allocation3], 16
    %523 = vst.msk [vmem:[%s522] sm:$0xf] %vm222, %v520
    %s524 = scalar_lea.vmem [#allocation2], 40
    %v525 = vld [vmem:[%s524] sm:$0xff]
    %v526 = vunpack.c.l.b16 %v517
    %v527 = vpack.c.b16 %v526, %v526
    %528 = vrot.lane.b32.xlu0 %v527, 64
    %v529 = vpop.permute.xlu0 %528
    %v531 = vsel %vm147, %v529, 0
    %533 = vmatpush.bf16.msra.mxu0 0
    %534 = vmatpush.bf16.msra.mxu0 0
    %535 = vmatpush.bf16.msra.mxu0 0
    %536 = vmatpush.bf16.msra.mxu0 0
    %537 = vmatpush.bf16.msra.mxu0 0
    %538 = vmatpush.bf16.msra.mxu0 0
    %539 = vmatpush.bf16.msra.mxu0 %v144
    %540 = vmatpush.bf16.msra.mxu0 %v143
    %541 = vmatmul.bf16.gmra.mxu0 %v531
    %v542 = vpop.f32.mrf.mxu0
    %v543 = vadd.f32 0.0, %v542
    %v544 = vpop.f32.mrf.mxu0
    %545 = vdwg.mxu0
    %v546 = vadd.f32 %v525, %v543
    %v547 = vxor.u32 %v546, 2147483648
    %v548 = vmul.f32 %v547, 1.442695
    %v549 = vpow.pop %v548
    %v550 = vadd.f32 %v549, 1.0
    %v551 = vrcp.pop %v550
    %v552 = vmul.f32 %v550, %v551
    %v553 = vsub.f32 1.0, %v552
    %v554 = vmul.f32 %v551, %v553
    %v555 = vadd.f32 %v551, %v554
    %vm556 = vweird.f32 %v550
    %vm557 = vweird.f32 %v551
    %vm558 = vmor %vm556, %vm557
    %v559 = vsel %vm558, %v551, %v555
    %v560 = vand.u32 2147483647, %v550
    %vm561 = vcmp.eq.f32.partialorder %v560, 8.507059e+37
    %v562 = vand.u32 %v550, 2147483648
    %v563 = vor.u32 1.1754944e-38, %v562
    %v564 = vsel %vm561, %v563, %v559
    %v565 = vmul.f32 1.0, %v564
    %v566 = vmul.f32 %v565, 2.0
    %v567 = vsub.f32 %v566, 1.0
    %v568 = vmul.f32 %v565, %v516
    %570 = vrot.lane.b32.xlu0 %v567, 32
    %v571 = vpop.permute.xlu0 %570
    %v573 = vmul.f32 %v565, %v571
    %575 = vrot.lane.b32.xlu0 %v573, 32
    %v576 = vpop.permute.xlu0 %575
    %v578 = vadd.f32 %v568, %v576
    %v579 = vtanh.pop %v578
    %581 = vrot.lane.b32.xlu0 %v579, 32
    %v582 = vpop.permute.xlu0 %581
    %v584 = vmul.f32 %v565, %v582
    %s585 = sadd.s32 %s130, 5
    %p586 = scmp.lt.s32.totalorder %s585, 8
    %s587 = scalar_select %p586, 1, 0
    %v588 = vstv %s587
    %vm589 = vcmp.eq.s32.totalorder %v588, 1
    %v590 = vsel %vm589, %v584, %v515
    %v591 = vsel %vm589, %v578, %v516
    %v592 = vpack.c.bf16 %v590, %v590
    %594 = vrot.lane.b32.xlu0 %v592, 64
    %v595 = vpop.permute.xlu0 %594
    %s597 = scalar_lea.vmem [#allocation3], 20
    %598 = vst.msk [vmem:[%s597] sm:$0xf] %vm222, %v595
    %s599 = scalar_lea.vmem [#allocation2], 48
    %v600 = vld [vmem:[%s599] sm:$0xff]
    %v601 = vunpack.c.l.b16 %v592
    %v602 = vpack.c.b16 %v601, %v601
    %603 = vrot.lane.b32.xlu0 %v602, 64
    %v604 = vpop.permute.xlu0 %603
    %v606 = vsel %vm147, %v604, 0
    %608 = vmatpush.bf16.msra.mxu0 0
    %609 = vmatpush.bf16.msra.mxu0 0
    %610 = vmatpush.bf16.msra.mxu0 0
    %611 = vmatpush.bf16.msra.mxu0 0
    %612 = vmatpush.bf16.msra.mxu0 0
    %613 = vmatpush.bf16.msra.mxu0 0
    %614 = vmatpush.bf16.msra.mxu0 %v144
    %615 = vmatpush.bf16.msra.mxu0 %v143
    %616 = vmatmul.bf16.gmra.mxu0 %v606
    %v617 = vpop.f32.mrf.mxu0
    %v618 = vadd.f32 0.0, %v617
    %v619 = vpop.f32.mrf.mxu0
    %620 = vdwg.mxu0
    %v621 = vadd.f32 %v600, %v618
    %v622 = vxor.u32 %v621, 2147483648
    %v623 = vmul.f32 %v622, 1.442695
    %v624 = vpow.pop %v623
    %v625 = vadd.f32 %v624, 1.0
    %v626 = vrcp.pop %v625
    %v627 = vmul.f32 %v625, %v626
    %v628 = vsub.f32 1.0, %v627
    %v629 = vmul.f32 %v626, %v628
    %v630 = vadd.f32 %v626, %v629
    %vm631 = vweird.f32 %v625
    %vm632 = vweird.f32 %v626
    %vm633 = vmor %vm631, %vm632
    %v634 = vsel %vm633, %v626, %v630
    %v635 = vand.u32 2147483647, %v625
    %vm636 = vcmp.eq.f32.partialorder %v635, 8.507059e+37
    %v637 = vand.u32 %v625, 2147483648
    %v638 = vor.u32 1.1754944e-38, %v637
    %v639 = vsel %vm636, %v638, %v634
    %v640 = vmul.f32 1.0, %v639
    %v641 = vmul.f32 %v640, 2.0
    %v642 = vsub.f32 %v641, 1.0
    %v643 = vmul.f32 %v640, %v591
    %645 = vrot.lane.b32.xlu0 %v642, 32
    %v646 = vpop.permute.xlu0 %645
    %v648 = vmul.f32 %v640, %v646
    %650 = vrot.lane.b32.xlu0 %v648, 32
    %v651 = vpop.permute.xlu0 %650
    %v653 = vadd.f32 %v643, %v651
    %v654 = vtanh.pop %v653
    %656 = vrot.lane.b32.xlu0 %v654, 32
    %v657 = vpop.permute.xlu0 %656
    %v659 = vmul.f32 %v640, %v657
    %s660 = sadd.s32 %s130, 6
    %p661 = scmp.lt.s32.totalorder %s660, 8
    %s662 = scalar_select %p661, 1, 0
    %v663 = vstv %s662
    %vm664 = vcmp.eq.s32.totalorder %v663, 1
    %v665 = vsel %vm664, %v659, %v590
    %v666 = vsel %vm664, %v653, %v591
    %v667 = vpack.c.bf16 %v665, %v665
    %669 = vrot.lane.b32.xlu0 %v667, 64
    %v670 = vpop.permute.xlu0 %669
    %s672 = scalar_lea.vmem [#allocation3], 24
    %673 = vst.msk [vmem:[%s672] sm:$0xf] %vm222, %v670
    %s674 = scalar_lea.vmem [#allocation2], 56
    %v675 = vld [vmem:[%s674] sm:$0xff]
    %v676 = vunpack.c.l.b16 %v667
    %v677 = vpack.c.b16 %v676, %v676
    %678 = vrot.lane.b32.xlu0 %v677, 64
    %v679 = vpop.permute.xlu0 %678
    %v681 = vsel %vm147, %v679, 0
    %683 = vmatpush.bf16.msra.mxu0 0
    %684 = vmatpush.bf16.msra.mxu0 0
    %685 = vmatpush.bf16.msra.mxu0 0
    %686 = vmatpush.bf16.msra.mxu0 0
    %687 = vmatpush.bf16.msra.mxu0 0
    %688 = vmatpush.bf16.msra.mxu0 0
    %689 = vmatpush.bf16.msra.mxu0 %v144
    %690 = vmatpush.bf16.msra.mxu0 %v143
    %691 = vmatmul.bf16.gmra.mxu0 %v681
    %v692 = vpop.f32.mrf.mxu0
    %v693 = vadd.f32 0.0, %v692
    %v694 = vpop.f32.mrf.mxu0
    %695 = vdwg.mxu0
    %v696 = vadd.f32 %v675, %v693
    %v697 = vxor.u32 %v696, 2147483648
    %v698 = vmul.f32 %v697, 1.442695
    %v699 = vpow.pop %v698
    %v700 = vadd.f32 %v699, 1.0
    %v701 = vrcp.pop %v700
    %v702 = vmul.f32 %v700, %v701
    %v703 = vsub.f32 1.0, %v702
    %v704 = vmul.f32 %v701, %v703
    %v705 = vadd.f32 %v701, %v704
    %vm706 = vweird.f32 %v700
    %vm707 = vweird.f32 %v701
    %vm708 = vmor %vm706, %vm707
    %v709 = vsel %vm708, %v701, %v705
    %v710 = vand.u32 2147483647, %v700
    %vm711 = vcmp.eq.f32.partialorder %v710, 8.507059e+37
    %v712 = vand.u32 %v700, 2147483648
    %v713 = vor.u32 1.1754944e-38, %v712
    %v714 = vsel %vm711, %v713, %v709
    %v715 = vmul.f32 1.0, %v714
    %v716 = vmul.f32 %v715, 2.0
    %v717 = vsub.f32 %v716, 1.0
    %v718 = vmul.f32 %v715, %v666
    %720 = vrot.lane.b32.xlu0 %v717, 32
    %v721 = vpop.permute.xlu0 %720
    %v723 = vmul.f32 %v715, %v721
    %725 = vrot.lane.b32.xlu0 %v723, 32
    %v726 = vpop.permute.xlu0 %725
    %v728 = vadd.f32 %v718, %v726
    %v729 = vtanh.pop %v728
    %731 = vrot.lane.b32.xlu0 %v729, 32
    %v732 = vpop.permute.xlu0 %731
    %v734 = vmul.f32 %v715, %v732
    %s735 = sadd.s32 %s130, 7
    %p736 = scmp.lt.s32.totalorder %s735, 8
    %s737 = scalar_select %p736, 1, 0
    %v738 = vstv %s737
    %vm739 = vcmp.eq.s32.totalorder %v738, 1
    %v740 = vsel %vm739, %v734, %v665
    %v741 = vsel %vm739, %v728, %v666
    %v742 = vpack.c.bf16 %v740, %v740
    %744 = vrot.lane.b32.xlu0 %v742, 64
    %v745 = vpop.permute.xlu0 %744
    %s747 = scalar_lea.vmem [#allocation3], 28
    %748 = vst.msk [vmem:[%s747] sm:$0xf] %vm222, %v745
    %750 = vrot.lane.b32.xlu0 %v740, 64
    %v751 = vpop.permute.xlu0 %750
    %753 = vst.msk [vmem:[#allocation4] sm:$0xff] %vm147, %v751
    %755 = vrot.lane.b32.xlu0 %v741, 96
    %v756 = vpop.permute.xlu0 %755
    %758 = vst.msk [vmem:[#allocation5] sm:$0xff] %vm147, %v756
    %v759 = vld [vmem:[#allocation3] sm:$0xf]
    %v760 = vld [vmem:[#allocation3 + $0x4] sm:$0xf]
    %v761 = vld [vmem:[#allocation3 + $0x8] sm:$0xf]
    %v762 = vld [vmem:[#allocation3 + $0xc] sm:$0xf]
    %v763 = vld [vmem:[#allocation3 + $0x10] sm:$0xf]
    %v764 = vld [vmem:[#allocation3 + $0x14] sm:$0xf]
    %v765 = vld [vmem:[#allocation3 + $0x18] sm:$0xf]
    %v766 = vld [vmem:[#allocation3 + $0x1c] sm:$0xf]
    %v767 = vld [vmem:[%s4] sm:$0xf]
    %v768 = vld [vmem:[%s4 + $0x4] sm:$0xf]
    %v769 = vld [vmem:[%s4 + $0x8] sm:$0xf]
    %v770 = vld [vmem:[%s4 + $0xc] sm:$0xf]
    %v771 = vld [vmem:[%s5] sm:$0x1]
    %v773 = vperm.slane %v771, 0
    %v783 = vunpack.c.l.b16 %v759
    %v784 = vunpack.c.l.b16 %v760
    %v785 = vunpack.c.l.b16 %v761
    %v786 = vunpack.c.l.b16 %v762
    %v787 = vunpack.c.l.b16 %v763
    %v788 = vunpack.c.l.b16 %v764
    %v789 = vunpack.c.l.b16 %v765
    %v790 = vunpack.c.l.b16 %v766
    %v791 = vpack.c.b16 %v784, %v783
    %v792 = vpack.c.b16 %v786, %v785
    %v793 = vpack.c.b16 %v788, %v787
    %v794 = vpack.c.b16 %v790, %v789
    %v799 = vunpack.c.l.b16 %v767
    %v800 = vunpack.c.l.b16 %v768
    %v801 = vunpack.c.l.b16 %v769
    %v802 = vunpack.c.l.b16 %v770
    %v803 = vpack.c.b16 %v800, %v799
    %v804 = vpack.c.b16 %v802, %v801
    %v808 = vsel %vm147, %v791, 0
    %v811 = vsel %vm147, %v792, 0
    %v814 = vsel %vm147, %v793, 0
    %v817 = vsel %vm147, %v794, 0
    %819 = vmatpush.bf16.msra.mxu0 0
    %820 = vmatpush.bf16.msra.mxu0 0
    %821 = vmatpush.bf16.msra.mxu0 0
    %822 = vmatpush.bf16.msra.mxu0 0
    %823 = vmatpush.bf16.msra.mxu0 0
    %824 = vmatpush.bf16.msra.mxu0 0
    %825 = vmatpush.bf16.msra.mxu0 %v804
    %826 = vmatpush.bf16.msra.mxu0 %v803
    %827 = vmatmul.bf16.gmra.mxu0 %v808
    %v828 = vpop.f32.mrf.mxu0
    %v829 = vadd.f32 %v773, %v828
    %v830 = vpop.f32.mrf.mxu0
    %v831 = vadd.f32 %v773, %v830
    %832 = vmatmul.bf16.gmra.mxu0 %v811
    %v833 = vpop.f32.mrf.mxu0
    %v834 = vadd.f32 %v773, %v833
    %v835 = vpop.f32.mrf.mxu0
    %v836 = vadd.f32 %v773, %v835
    %837 = vmatmul.bf16.gmra.mxu0 %v814
    %v838 = vpop.f32.mrf.mxu0
    %v839 = vadd.f32 %v773, %v838
    %v840 = vpop.f32.mrf.mxu0
    %v841 = vadd.f32 %v773, %v840
    %842 = vmatmul.bf16.gmra.mxu0 %v817
    %v843 = vpop.f32.mrf.mxu0
    %v844 = vadd.f32 %v773, %v843
    %v845 = vpop.f32.mrf.mxu0
    %v846 = vadd.f32 %v773, %v845
    %847 = vdwg.mxu0
    %848 = vst [vmem:[#allocation6] sm:$0xff] %v829
    %849 = vst [vmem:[#allocation6 + $0x8] sm:$0xff] %v831
    %850 = vst [vmem:[#allocation6 + $0x10] sm:$0xff] %v834
    %851 = vst [vmem:[#allocation6 + $0x18] sm:$0xff] %v836
    %852 = vst [vmem:[#allocation6 + $0x20] sm:$0xff] %v839
    %853 = vst [vmem:[#allocation6 + $0x28] sm:$0xff] %v841
    %854 = vst [vmem:[#allocation6 + $0x30] sm:$0xff] %v844
    %855 = vst [vmem:[#allocation6 + $0x38] sm:$0xff] %v846
    // Predicated region
    $region30: #{tpu_custom_call.1} parent=1 // pred_check
      %p856 = pneg %p29
    $region31: #{tpu_custom_call.1} parent=1 // pred_check_branch
      %858 = sbr.rel (%p856) target = $region33
    $region32: #{tpu_custom_call.1} parent=1 // pred_region
      %859 = vst.msk [vmem:[#allocation8] sm:$0xff] %vm147, %v751
      %860 = vst.msk [vmem:[#allocation10] sm:$0xff] %vm147, %v756
    $region33: #{tpu_custom_call.1} parent=1 // pred_fallthru
      _
    // Predicated region
    $region34: #{tpu_custom_call.1} parent=1 // pred_check
      _
    $region35: #{tpu_custom_call.1} parent=1 // pred_check_branch
      %862 = sbr.rel (0) target = $region37
    $region36: #{tpu_custom_call.1} parent=1 // pred_region
      %864 = vsyncadd [#allocation7], 0
      %s865 = sshll.u32 [#allocation6], 4
      %s866 = int_to_ptr.vmem [resolvable:$true] %s865
      %s867 = sshll.u32 %s6, 4
      %s868 = int_to_ptr.hbm [resolvable:$true] %s867
      %873 = dma.vmem_to_hbm [thread:$0]  %s866, 1024, %s868, [#allocation7], 128, 128, 8
    $region37: #{tpu_custom_call.1} parent=1 // pred_fallthru
      _
    // Predicated region
    $region38: #{tpu_custom_call.1} parent=1 // pred_check
      _
    $region39: #{tpu_custom_call.1} parent=1 // pred_check_branch
      %875 = sbr.rel (0) target = $region41
    $region40: #{tpu_custom_call.1} parent=1 // pred_region
      %877 = vsyncadd [#allocation9], 0
      %s879 = sshll.u32 [#allocation8], 4
      %s880 = int_to_ptr.vmem [resolvable:$true] %s879
      %s881 = sshll.u32 %s7, 4
      %s882 = int_to_ptr.hbm [resolvable:$true] %s881
      %884 = dma.vmem_to_hbm [thread:$0]  %s880, 128, %s882, [#allocation9]
    $region41: #{tpu_custom_call.1} parent=1 // pred_fallthru
      _
    // Predicated region
    $region42: #{tpu_custom_call.1} parent=1 // pred_check
      _
    $region43: #{tpu_custom_call.1} parent=1 // pred_check_branch
      %886 = sbr.rel (0) target = $region45
    $region44: #{tpu_custom_call.1} parent=1 // pred_region
      %888 = vsyncadd [#allocation9], 0
      %s890 = sshll.u32 [#allocation10], 4
      %s891 = int_to_ptr.vmem [resolvable:$true] %s890
      %s892 = sshll.u32 %s8, 4
      %s893 = int_to_ptr.hbm [resolvable:$true] %s892
      %895 = dma.vmem_to_hbm [thread:$0]  %s891, 128, %s893, [#allocation9]
    $region45: #{tpu_custom_call.1} parent=1 // pred_fallthru
      _
    // Predicated region
    $region46: #{tpu_custom_call.1} parent=1 // pred_check
      _
    $region47: #{tpu_custom_call.1} parent=1 // pred_check_branch
      %897 = sbr.rel (0) target = $region49
    $region48: #{tpu_custom_call.1} parent=1 // pred_region
      %899 = dma.done [#allocation7], 1024
    $region49: #{tpu_custom_call.1} parent=1 // pred_fallthru
      _
    // Predicated region
    $region50: #{tpu_custom_call.1} parent=1 // pred_check
      _
    $region51: #{tpu_custom_call.1} parent=1 // pred_check_branch
      %901 = sbr.rel (0) target = $region53
    $region52: #{tpu_custom_call.1} parent=1 // pred_region
      %903 = dma.done [#allocation9], 128
    $region53: #{tpu_custom_call.1} parent=1 // pred_fallthru
      _
    // Predicated region
    $region54: #{tpu_custom_call.1} parent=1 // pred_check
      _
    $region55: #{tpu_custom_call.1} parent=1 // pred_check_branch
      %905 = sbr.rel (0) target = $region57
    $region56: #{tpu_custom_call.1} parent=1 // pred_region
      %907 = dma.done [#allocation9], 128
    $region57: #{tpu_custom_call.1} parent=1 // pred_fallthru
      _
    %908 = vsyncpa [#allocation7], 1
    %909 = vsyncpa [#allocation9], 1

</llo_original>
